<compile_context>
chip_gen: v7x
topology: tpu7x:2x2x1
jax: 0.10.0
libtpu: 0.0.40
codegen_flags: <defaults>
</compile_context>

<pallas_src>
import functools

import jax
import jax.numpy as jnp
from jax import lax
from jax.experimental import pallas as pl
from jax.experimental.pallas import tpu as pltpu


def _round_up(x, m):
    return (x + m - 1) // m * m


def _vmem_capacity_bytes():
    try:
        info = pltpu.get_tpu_info()
        cap = getattr(info, "vmem_capacity_bytes", None)
        if cap:
            return int(cap)
    except Exception:
        pass
    return 64 << 20  # conservative fallback (v7x per-core VMEM)


# -----------------------------------------------------------------------------
# Pallas kernel: Bt images per grid step, full H/W and (padded) channels in VMEM.
# -----------------------------------------------------------------------------
def _bottleneck_kernel(
    x_ref,        # (Bt, H*W, Cin)   bf16 (host-flattened)
    w1_ref,       # (Cin, P)         bf16, bn1 scale folded in
    b1_ref,       # (1, P)           f32
    w2_ref,       # (3, 3*P, P)      bf16, bn2 scale folded in (row-group layout)
    b2_ref,       # (1, P)           f32
    w3_ref,       # (P, Cout)        bf16, bn3 scale folded in
    b3_ref,       # (1, Cout)        f32
    ws_ref,       # (Cin, Cout)      bf16, shortcut bn scale folded in
    bs_ref,       # (1, Cout)        f32
    out_ref,      # (Bt, H*W, Cout)  bf16
    pad_ref,      # scratch VMEM (Bt, H+2, Wp2, P) bf16 — zero-bordered conv2 input
    *, Bt, H, W, Cin, P, Cout,
):
    HW = H * W
    Wp2 = pad_ref.shape[2]

    # Zero only the border of the pad buffer; the interior [1:H+1, 1:W+1] is
    # fully overwritten below every grid step.  The column zero covers
    # [W+1, Wp2) so the sublane-rounding tail is never garbage even if the tap
    # window widens later (megacore-safe: done every step).
    pad_ref[:, 0:1, :, :] = jnp.zeros((Bt, 1, Wp2, P), jnp.bfloat16)
    pad_ref[:, H + 1:H + 2, :, :] = jnp.zeros((Bt, 1, Wp2, P), jnp.bfloat16)
    pad_ref[:, :, 0:1, :] = jnp.zeros((Bt, H + 2, 1, P), jnp.bfloat16)
    pad_ref[:, :, W + 1:Wp2, :] = jnp.zeros(
        (Bt, H + 2, Wp2 - (W + 1), P), jnp.bfloat16)

    x = x_ref[...].reshape(Bt * HW, Cin)                  # (M, Cin) bf16

    # ---- conv1 (1x1) + bn1 (scale folded) + relu --------------------------
    h1 = jnp.dot(x, w1_ref[...], preferred_element_type=jnp.float32)
    h1 = jnp.maximum(h1 + b1_ref[...], 0.0)               # (M, P) f32
    pad_ref[:, 1:H + 1, 1:W + 1, :] = (
        h1.reshape(Bt, H, W, P).astype(jnp.bfloat16))

    # ---- conv2 (3x3, pad=1, stride=1): 3-row-group accumulated matmuls ----
    # patches3[b, r, j, dj*P + p] = pad[b, r, j + dj, p]
    patches3 = jnp.concatenate(
        [pad_ref[:, :, 0:W, :],
         pad_ref[:, :, 1:W + 1, :],
         pad_ref[:, :, 2:W + 2, :]],
        axis=-1)                                           # (Bt, H+2, W, 3P) bf16

    acc2 = jnp.zeros((Bt * HW, P), jnp.float32)
    for di in range(3):                                    # static unroll
        lhs = patches3[:, di:di + H, :, :].reshape(Bt * HW, 3 * P)
        acc2 = acc2 + jnp.dot(lhs, w2_ref[di],
                              preferred_element_type=jnp.float32)
    h2 = jnp.maximum(acc2 + b2_ref[...], 0.0).astype(jnp.bfloat16)   # (M, P)

    # ---- projection shortcut first (single f32 accumulator) ---------------
    acc = jnp.dot(x, ws_ref[...], preferred_element_type=jnp.float32)
    acc = acc + bs_ref[...]                                # (M, Cout) f32

    # ---- conv3 (1x1) + bn3 added into the same accumulator ----------------
    acc = acc + jnp.dot(h2, w3_ref[...], preferred_element_type=jnp.float32)
    acc = acc + b3_ref[...]

    # ---- residual relu, bf16 store -----------------------------------------
    out_ref[...] = jnp.maximum(acc, 0.0).reshape(Bt, HW, Cout).astype(jnp.bfloat16)


def bottleneck_pallas(x, params):
    """x: (N, H, W, Cin) float32 (NHWC). Returns (N, H, W, Cout) bfloat16."""
    N, H, W, Cin = x.shape
    P = params["w1"].shape[1]
    Cout = params["w3"].shape[1]
    HW = H * W

    LANE = 128
    Cinp = _round_up(Cin, LANE)
    Pp = _round_up(P, LANE)
    Coutp = _round_up(Cout, LANE)
    Wp2 = _round_up(W + 2, 8)          # sublane-aligned scratch width

    # Batch several images per grid step when the feature map is small so the
    # matmul M dim (Bt*H*W) better fills the MXU rows.
    Bt = max(1, min(N, 256 // max(HW, 1)))
    Np = _round_up(N, Bt)

    def pad_to(a, shape):
        return jnp.pad(a, [(0, s - d) for d, s in zip(a.shape, shape)])

    # Fold BN scales into conv weights (per output channel), pad channels to
    # lane width, cast weights/activations to bf16 for the MXU.
    w1 = pad_to(params["w1"] * params["s1"], (Cinp, Pp)).astype(jnp.bfloat16)
    b1 = pad_to(params["b1"], (1, Pp)).astype(jnp.float32)
    w2f = params["w2"] * params["s2"].reshape(1, 1, 1, P)          # (3,3,P,P)
    w2 = pad_to(w2f, (3, 3, Pp, Pp)).reshape(3, 3 * Pp, Pp).astype(jnp.bfloat16)
    b2 = pad_to(params["b2"], (1, Pp)).astype(jnp.float32)
    w3 = pad_to(params["w3"] * params["s3"], (Pp, Coutp)).astype(jnp.bfloat16)
    b3 = pad_to(params["b3"], (1, Coutp)).astype(jnp.float32)
    ws = pad_to(params["ws"] * params["ss"], (Cinp, Coutp)).astype(jnp.bfloat16)
    bs = pad_to(params["bs"], (1, Coutp)).astype(jnp.float32)

    # Host-side flatten to (N, H*W, C) so the kernel never relayouts full
    # activations between (H, W, C) and (H*W, C).
    xp = pad_to(x, (N, H, W, Cinp)).reshape(N, HW, Cinp)
    if Np != N:
        xp = jnp.pad(xp, ((0, Np - N), (0, 0), (0, 0)))
    xp = xp.astype(jnp.bfloat16)

    kernel = functools.partial(
        _bottleneck_kernel, Bt=Bt, H=H, W=W, Cin=Cinp, P=Pp, Cout=Coutp)

    weight_args = [w1, b1, w2, b2, w3, b3, ws, bs]

    def full_spec(a):
        nd = a.ndim
        return pl.BlockSpec(a.shape, lambda n, _nd=nd: (0,) * _nd)

    in_specs = [pl.BlockSpec((Bt, HW, Cinp), lambda n: (n, 0, 0))]
    in_specs += [full_spec(a) for a in weight_args]
    out_spec = pl.BlockSpec((Bt, HW, Coutp), lambda n: (n, 0, 0))

    # Advisory cost estimate for XLA scheduling around the custom call.
    flops = 2 * Np * HW * (Cinp * Pp + 9 * Pp * Pp + Pp * Coutp + Cinp * Coutp)
    bytes_accessed = (
        int(xp.size) * 2 + Np * HW * Coutp * 2
        + sum(int(a.size) * a.dtype.itemsize for a in weight_args))

    # Explicit VMEM budget (in/out blocks and weights double-buffered) + temps.
    vmem_budget = (
        2 * Bt * HW * Cinp * 2                              # x blocks (bf16)
        + 2 * Bt * HW * Coutp * 2                           # out blocks (bf16)
        + 2 * (Cinp * Pp + 9 * Pp * Pp + Pp * Coutp + Cinp * Coutp) * 2  # weights
        + 2 * (2 * Pp + 2 * Coutp) * 4                      # biases
        + Bt * (H + 2) * Wp2 * Pp * 2                       # pad scratch
        + Bt * (H + 2) * W * 3 * Pp * 2                     # patches3 (bf16)
        + 4 * Bt * HW * max(Pp, Coutp) * 4)                 # live f32 temps
    vmem_cap = _vmem_capacity_bytes()
    vmem_limit = int(min(max(int(1.5 * vmem_budget), 16 << 20),
                         int(0.75 * vmem_cap)))

    out_padded = pl.pallas_call(
        kernel,
        out_shape=jax.ShapeDtypeStruct((Np, HW, Coutp), jnp.bfloat16),
        grid_spec=pltpu.PrefetchScalarGridSpec(
            num_scalar_prefetch=0,
            grid=(Np // Bt,),
            in_specs=in_specs,
            out_specs=out_spec,
            scratch_shapes=[pltpu.VMEM((Bt, H + 2, Wp2, Pp), jnp.bfloat16)],
        ),
        compiler_params=pltpu.CompilerParams(
            dimension_semantics=("parallel",),
            vmem_limit_bytes=vmem_limit,
        ),
        cost_estimate=pl.CostEstimate(
            flops=flops, transcendentals=0, bytes_accessed=bytes_accessed),
    )(xp, *weight_args)

    out = out_padded[:N, :, :Cout].reshape(N, H, W, Cout)
    return out   # bf16; caller may cast to f32 if required


# -----------------------------------------------------------------------------
# Parameter construction (deterministic) + pure-JAX f32 reference.
# -----------------------------------------------------------------------------
def fold_bn(gamma, beta, mean, var, eps=1e-5):
    scale = gamma / jnp.sqrt(var + eps)
    bias = beta - mean * scale
    return scale.reshape(1, -1), bias.reshape(1, -1)


def make_params(key, in_planes, planes, expansion=4):
    cout = expansion * planes
    ks = jax.random.split(key, 16)

    def bn_params(k, c):
        k1, k2, k3, k4 = jax.random.split(k, 4)
        gamma = 1.0 + 0.1 * jax.random.normal(k1, (c,), jnp.float32)
        beta = 0.1 * jax.random.normal(k2, (c,), jnp.float32)
        mean = 0.1 * jax.random.normal(k3, (c,), jnp.float32)
        var = 1.0 + 0.2 * jax.random.uniform(k4, (c,), jnp.float32)
        return fold_bn(gamma, beta, mean, var)

    w1 = 0.1 * jax.random.normal(ks[0], (in_planes, planes), jnp.float32)
    s1, b1 = bn_params(ks[1], planes)
    w2 = 0.1 * jax.random.normal(ks[2], (3, 3, planes, planes), jnp.float32)
    s2, b2 = bn_params(ks[3], planes)
    w3 = 0.1 * jax.random.normal(ks[4], (planes, cout), jnp.float32)
    s3, b3 = bn_params(ks[5], cout)
    ws = 0.1 * jax.random.normal(ks[6], (in_planes, cout), jnp.float32)
    ss, bs = bn_params(ks[7], cout)

    return dict(w1=w1, s1=s1, b1=b1, w2=w2, s2=s2, b2=b2,
                w3=w3, s3=s3, b3=b3, ws=ws, ss=ss, bs=bs)


def bottleneck_ref(x, p):
    """Pure-JAX f32 reference (NHWC convs) for correctness checking."""
    dn = ("NHWC", "HWIO", "NHWC")
    h = lax.conv_general_dilated(x, p["w1"][None, None], (1, 1), "VALID",
                                 dimension_numbers=dn)
    h = jnp.maximum(h * p["s1"] + p["b1"], 0.0)
    h = lax.conv_general_dilated(h, p["w2"], (1, 1), [(1, 1), (1, 1)],
                                 dimension_numbers=dn)
    h = jnp.maximum(h * p["s2"] + p["b2"], 0.0)
    h = lax.conv_general_dilated(h, p["w3"][None, None], (1, 1), "VALID",
                                 dimension_numbers=dn)
    h = h * p["s3"] + p["b3"]
    sc = lax.conv_general_dilated(x, p["ws"][None, None], (1, 1), "VALID",
                                  dimension_numbers=dn)
    sc = sc * p["ss"] + p["bs"]
    return jnp.maximum(h + sc, 0.0)


if __name__ == "__main__":
    # Small shapes: Bottleneck(in_planes=16, planes=8) -> out channels 32.
    N, H, W = 2, 8, 8
    in_planes, planes = 16, 8

    key = jax.random.PRNGKey(0)
    kx, kp = jax.random.split(key)
    x = jax.random.normal(kx, (N, H, W, in_planes), jnp.float32)
    params = make_params(kp, in_planes, planes)

    out = bottleneck_pallas(x, params)
    out = jax.block_until_ready(out)

    ref = bottleneck_ref(x, params)
    assert out.shape == (N, H, W, 4 * planes)
    # bf16 MXU feeds + bf16 staging + bf16 output -> loosened tolerance.
    assert jnp.allclose(out.astype(jnp.float32), ref, atol=5e-2, rtol=5e-2), \
        "mismatch vs reference"

    print("KERNEL_OK")
</pallas_src>

<mosaic_0001>
module attributes {stable_mosaic.version = 11 : i64} {
  func.func @_bottleneck_kernel(%arg0: i32, %arg1: memref<2x64x128xbf16, #tpu.memory_space<vmem>>, %arg2: memref<128x128xbf16, #tpu.memory_space<vmem>>, %arg3: memref<1x128xf32, #tpu.memory_space<vmem>>, %arg4: memref<3x384x128xbf16, #tpu.memory_space<vmem>>, %arg5: memref<1x128xf32, #tpu.memory_space<vmem>>, %arg6: memref<128x128xbf16, #tpu.memory_space<vmem>>, %arg7: memref<1x128xf32, #tpu.memory_space<vmem>>, %arg8: memref<128x128xbf16, #tpu.memory_space<vmem>>, %arg9: memref<1x128xf32, #tpu.memory_space<vmem>>, %arg10: memref<2x64x128xbf16, #tpu.memory_space<vmem>>, %arg11: memref<2x10x16x128xbf16, #tpu.memory_space<vmem>>) attributes {dimension_semantics = [#tpu.dimension_semantics<parallel>], iteration_bounds = array<i64: 1>, scalar_prefetch = 0 : i64, scratch_operands = 1 : i64, tpu.core_type = #tpu.core_type<tc>, window_params = [{transform_indices = @transform_0, window_bounds = array<i64: 2, 64, 128>}, {pipeline_mode = #tpu.pipeline_mode<synchronous>, transform_indices = @transform_1, window_bounds = array<i64: 128, 128>}, {pipeline_mode = #tpu.pipeline_mode<synchronous>, transform_indices = @transform_2, window_bounds = array<i64: 1, 128>}, {pipeline_mode = #tpu.pipeline_mode<synchronous>, transform_indices = @transform_3, window_bounds = array<i64: 3, 384, 128>}, {pipeline_mode = #tpu.pipeline_mode<synchronous>, transform_indices = @transform_4, window_bounds = array<i64: 1, 128>}, {pipeline_mode = #tpu.pipeline_mode<synchronous>, transform_indices = @transform_5, window_bounds = array<i64: 128, 128>}, {pipeline_mode = #tpu.pipeline_mode<synchronous>, transform_indices = @transform_6, window_bounds = array<i64: 1, 128>}, {pipeline_mode = #tpu.pipeline_mode<synchronous>, transform_indices = @transform_7, window_bounds = array<i64: 128, 128>}, {pipeline_mode = #tpu.pipeline_mode<synchronous>, transform_indices = @transform_8, window_bounds = array<i64: 1, 128>}, {transform_indices = @transform_9, window_bounds = array<i64: 2, 64, 128>}]} {
    %cst = arith.constant 0.000000e+00 : bf16
    %0 = vector.broadcast %cst : bf16 to vector<2x1x16x128xbf16>
    %c0 = arith.constant 0 : index
    %c0_0 = arith.constant 0 : index
    %c0_1 = arith.constant 0 : index
    %c0_2 = arith.constant 0 : index
    %1 = vector.load %arg11[%c0, %c0_0, %c0_1, %c0_2] : memref<2x10x16x128xbf16, #tpu.memory_space<vmem>>, vector<2x1x16x128xbf16>
    tpu.vector_store %arg11[%c0, %c0_0, %c0_1, %c0_2], %0 {strides = array<i32>} : memref<2x10x16x128xbf16, #tpu.memory_space<vmem>>, vector<2x1x16x128xbf16>,
    %cst_3 = arith.constant 0.000000e+00 : bf16
    %2 = vector.broadcast %cst_3 : bf16 to vector<2x1x16x128xbf16>
    %c0_4 = arith.constant 0 : index
    %c9 = arith.constant 9 : index
    %c0_5 = arith.constant 0 : index
    %c0_6 = arith.constant 0 : index
    %3 = vector.load %arg11[%c0_4, %c9, %c0_5, %c0_6] : memref<2x10x16x128xbf16, #tpu.memory_space<vmem>>, vector<2x1x16x128xbf16>
    tpu.vector_store %arg11[%c0_4, %c9, %c0_5, %c0_6], %2 {strides = array<i32>} : memref<2x10x16x128xbf16, #tpu.memory_space<vmem>>, vector<2x1x16x128xbf16>,
    %cst_7 = arith.constant 0.000000e+00 : bf16
    %4 = vector.broadcast %cst_7 : bf16 to vector<2x10x1x128xbf16>
    %c0_8 = arith.constant 0 : index
    %c0_9 = arith.constant 0 : index
    %c0_10 = arith.constant 0 : index
    %c0_11 = arith.constant 0 : index
    %5 = vector.load %arg11[%c0_8, %c0_9, %c0_10, %c0_11] : memref<2x10x16x128xbf16, #tpu.memory_space<vmem>>, vector<2x10x1x128xbf16>
    tpu.vector_store %arg11[%c0_8, %c0_9, %c0_10, %c0_11], %4 {strides = array<i32>} : memref<2x10x16x128xbf16, #tpu.memory_space<vmem>>, vector<2x10x1x128xbf16>,
    %cst_12 = arith.constant 0.000000e+00 : bf16
    %6 = vector.broadcast %cst_12 : bf16 to vector<2x10x7x128xbf16>
    %c0_13 = arith.constant 0 : index
    %c0_14 = arith.constant 0 : index
    %c9_15 = arith.constant 9 : index
    %c0_16 = arith.constant 0 : index
    %7 = vector.load %arg11[%c0_13, %c0_14, %c9_15, %c0_16] : memref<2x10x16x128xbf16, #tpu.memory_space<vmem>>, vector<2x10x7x128xbf16>
    tpu.vector_store %arg11[%c0_13, %c0_14, %c9_15, %c0_16], %6 {strides = array<i32>} : memref<2x10x16x128xbf16, #tpu.memory_space<vmem>>, vector<2x10x7x128xbf16>,
    %c0_17 = arith.constant 0 : index
    %c0_18 = arith.constant 0 : index
    %c0_19 = arith.constant 0 : index
    %8 = vector.load %arg1[%c0_17, %c0_18, %c0_19] : memref<2x64x128xbf16, #tpu.memory_space<vmem>>, vector<2x64x128xbf16>
    %9 = vector.shape_cast %8 : vector<2x64x128xbf16> to vector<128x128xbf16>
    %c0_20 = arith.constant 0 : index
    %c0_21 = arith.constant 0 : index
    %10 = vector.load %arg2[%c0_20, %c0_21] : memref<128x128xbf16, #tpu.memory_space<vmem>>, vector<128x128xbf16>
    %cst_22 = arith.constant dense<0.000000e+00> : vector<128x128xf32>
    %11 = tpu.matmul %9, %10, %cst_22 {dimension_numbers = #tpu.dot_dimension_numbers<[1], [0], [0], [1], [0, 0, 1, 1], [], []>} : vector<128x128xbf16>, vector<128x128xbf16>, vector<128x128xf32> -> vector<128x128xf32>
    %c0_23 = arith.constant 0 : index
    %c0_24 = arith.constant 0 : index
    %12 = vector.load %arg3[%c0_23, %c0_24] : memref<1x128xf32, #tpu.memory_space<vmem>>, vector<1x128xf32>
    %13 = vector.broadcast %12 : vector<1x128xf32> to vector<128x128xf32>
    %14 = arith.addf %11, %13 : vector<128x128xf32>
    %cst_25 = arith.constant 0.000000e+00 : f32
    %15 = vector.broadcast %cst_25 : f32 to vector<128x128xf32>
    %16 = arith.maximumf %14, %15 : vector<128x128xf32>
    %17 = vector.shape_cast %16 : vector<128x128xf32> to vector<2x8x8x128xf32>
    %18 = arith.truncf %17 : vector<2x8x8x128xf32> to vector<2x8x8x128xbf16>
    %c0_26 = arith.constant 0 : index
    %c1 = arith.constant 1 : index
    %c1_27 = arith.constant 1 : index
    %c0_28 = arith.constant 0 : index
    %19 = vector.load %arg11[%c0_26, %c1, %c1_27, %c0_28] : memref<2x10x16x128xbf16, #tpu.memory_space<vmem>>, vector<2x8x8x128xbf16>
    tpu.vector_store %arg11[%c0_26, %c1, %c1_27, %c0_28], %18 {strides = array<i32>} : memref<2x10x16x128xbf16, #tpu.memory_space<vmem>>, vector<2x8x8x128xbf16>,
    %c0_29 = arith.constant 0 : index
    %c0_30 = arith.constant 0 : index
    %c0_31 = arith.constant 0 : index
    %c0_32 = arith.constant 0 : index
    %20 = vector.load %arg11[%c0_29, %c0_30, %c0_31, %c0_32] : memref<2x10x16x128xbf16, #tpu.memory_space<vmem>>, vector<2x10x8x128xbf16>
    %c0_33 = arith.constant 0 : index
    %c0_34 = arith.constant 0 : index
    %c1_35 = arith.constant 1 : index
    %c0_36 = arith.constant 0 : index
    %21 = vector.load %arg11[%c0_33, %c0_34, %c1_35, %c0_36] : memref<2x10x16x128xbf16, #tpu.memory_space<vmem>>, vector<2x10x8x128xbf16>
    %c0_37 = arith.constant 0 : index
    %c0_38 = arith.constant 0 : index
    %c2 = arith.constant 2 : index
    %c0_39 = arith.constant 0 : index
    %22 = vector.load %arg11[%c0_37, %c0_38, %c2, %c0_39] : memref<2x10x16x128xbf16, #tpu.memory_space<vmem>>, vector<2x10x8x128xbf16>
    %23 = tpu.concatenate %20, %21, %22 in 3 : vector<2x10x8x128xbf16>, vector<2x10x8x128xbf16>, vector<2x10x8x128xbf16> -> vector<2x10x8x384xbf16>
    %cst_40 = arith.constant 0.000000e+00 : f32
    %24 = vector.broadcast %cst_40 : f32 to vector<128x128xf32>
    %25 = vector.extract_strided_slice %23 {offsets = [0, 0, 0, 0], sizes = [2, 8, 8, 384], strides = [1, 1, 1, 1]} : vector<2x10x8x384xbf16> to vector<2x8x8x384xbf16>
    %26 = vector.shape_cast %25 : vector<2x8x8x384xbf16> to vector<128x384xbf16>
    %c0_41 = arith.constant 0 : index
    %c0_42 = arith.constant 0 : index
    %c0_43 = arith.constant 0 : index
    %27 = vector.load %arg4[%c0_41, %c0_42, %c0_43] : memref<3x384x128xbf16, #tpu.memory_space<vmem>>, vector<1x384x128xbf16>
    %28 = vector.shape_cast %27 : vector<1x384x128xbf16> to vector<384x128xbf16>
    %cst_44 = arith.constant dense<0.000000e+00> : vector<128x128xf32>
    %29 = tpu.matmul %26, %28, %cst_44 {dimension_numbers = #tpu.dot_dimension_numbers<[1], [0], [0], [1], [0, 0, 1, 1], [], []>} : vector<128x384xbf16>, vector<384x128xbf16>, vector<128x128xf32> -> vector<128x128xf32>
    %30 = arith.addf %24, %29 : vector<128x128xf32>
    %31 = vector.extract_strided_slice %23 {offsets = [0, 1, 0, 0], sizes = [2, 8, 8, 384], strides = [1, 1, 1, 1]} : vector<2x10x8x384xbf16> to vector<2x8x8x384xbf16>
    %32 = vector.shape_cast %31 : vector<2x8x8x384xbf16> to vector<128x384xbf16>
    %c1_45 = arith.constant 1 : index
    %c0_46 = arith.constant 0 : index
    %c0_47 = arith.constant 0 : index
    %33 = vector.load %arg4[%c1_45, %c0_46, %c0_47] : memref<3x384x128xbf16, #tpu.memory_space<vmem>>, vector<1x384x128xbf16>
    %34 = vector.shape_cast %33 : vector<1x384x128xbf16> to vector<384x128xbf16>
    %cst_48 = arith.constant dense<0.000000e+00> : vector<128x128xf32>
    %35 = tpu.matmul %32, %34, %cst_48 {dimension_numbers = #tpu.dot_dimension_numbers<[1], [0], [0], [1], [0, 0, 1, 1], [], []>} : vector<128x384xbf16>, vector<384x128xbf16>, vector<128x128xf32> -> vector<128x128xf32>
    %36 = arith.addf %30, %35 : vector<128x128xf32>
    %37 = vector.extract_strided_slice %23 {offsets = [0, 2, 0, 0], sizes = [2, 8, 8, 384], strides = [1, 1, 1, 1]} : vector<2x10x8x384xbf16> to vector<2x8x8x384xbf16>
    %38 = vector.shape_cast %37 : vector<2x8x8x384xbf16> to vector<128x384xbf16>
    %c2_49 = arith.constant 2 : index
    %c0_50 = arith.constant 0 : index
    %c0_51 = arith.constant 0 : index
    %39 = vector.load %arg4[%c2_49, %c0_50, %c0_51] : memref<3x384x128xbf16, #tpu.memory_space<vmem>>, vector<1x384x128xbf16>
    %40 = vector.shape_cast %39 : vector<1x384x128xbf16> to vector<384x128xbf16>
    %cst_52 = arith.constant dense<0.000000e+00> : vector<128x128xf32>
    %41 = tpu.matmul %38, %40, %cst_52 {dimension_numbers = #tpu.dot_dimension_numbers<[1], [0], [0], [1], [0, 0, 1, 1], [], []>} : vector<128x384xbf16>, vector<384x128xbf16>, vector<128x128xf32> -> vector<128x128xf32>
    %42 = arith.addf %36, %41 : vector<128x128xf32>
    %c0_53 = arith.constant 0 : index
    %c0_54 = arith.constant 0 : index
    %43 = vector.load %arg5[%c0_53, %c0_54] : memref<1x128xf32, #tpu.memory_space<vmem>>, vector<1x128xf32>
    %44 = vector.broadcast %43 : vector<1x128xf32> to vector<128x128xf32>
    %45 = arith.addf %42, %44 : vector<128x128xf32>
    %cst_55 = arith.constant 0.000000e+00 : f32
    %46 = vector.broadcast %cst_55 : f32 to vector<128x128xf32>
    %47 = arith.maximumf %45, %46 : vector<128x128xf32>
    %48 = arith.truncf %47 : vector<128x128xf32> to vector<128x128xbf16>
    %c0_56 = arith.constant 0 : index
    %c0_57 = arith.constant 0 : index
    %49 = vector.load %arg8[%c0_56, %c0_57] : memref<128x128xbf16, #tpu.memory_space<vmem>>, vector<128x128xbf16>
    %cst_58 = arith.constant dense<0.000000e+00> : vector<128x128xf32>
    %50 = tpu.matmul %9, %49, %cst_58 {dimension_numbers = #tpu.dot_dimension_numbers<[1], [0], [0], [1], [0, 0, 1, 1], [], []>} : vector<128x128xbf16>, vector<128x128xbf16>, vector<128x128xf32> -> vector<128x128xf32>
    %c0_59 = arith.constant 0 : index
    %c0_60 = arith.constant 0 : index
    %51 = vector.load %arg9[%c0_59, %c0_60] : memref<1x128xf32, #tpu.memory_space<vmem>>, vector<1x128xf32>
    %52 = vector.broadcast %51 : vector<1x128xf32> to vector<128x128xf32>
    %53 = arith.addf %50, %52 : vector<128x128xf32>
    %c0_61 = arith.constant 0 : index
    %c0_62 = arith.constant 0 : index
    %54 = vector.load %arg6[%c0_61, %c0_62] : memref<128x128xbf16, #tpu.memory_space<vmem>>, vector<128x128xbf16>
    %cst_63 = arith.constant dense<0.000000e+00> : vector<128x128xf32>
    %55 = tpu.matmul %48, %54, %cst_63 {dimension_numbers = #tpu.dot_dimension_numbers<[1], [0], [0], [1], [0, 0, 1, 1], [], []>} : vector<128x128xbf16>, vector<128x128xbf16>, vector<128x128xf32> -> vector<128x128xf32>
    %56 = arith.addf %53, %55 : vector<128x128xf32>
    %c0_64 = arith.constant 0 : index
    %c0_65 = arith.constant 0 : index
    %57 = vector.load %arg7[%c0_64, %c0_65] : memref<1x128xf32, #tpu.memory_space<vmem>>, vector<1x128xf32>
    %58 = vector.broadcast %57 : vector<1x128xf32> to vector<128x128xf32>
    %59 = arith.addf %56, %58 : vector<128x128xf32>
    %cst_66 = arith.constant 0.000000e+00 : f32
    %60 = vector.broadcast %cst_66 : f32 to vector<128x128xf32>
    %61 = arith.maximumf %59, %60 : vector<128x128xf32>
    %62 = vector.shape_cast %61 : vector<128x128xf32> to vector<2x64x128xf32>
    %63 = arith.truncf %62 : vector<2x64x128xf32> to vector<2x64x128xbf16>
    %c0_67 = arith.constant 0 : index
    %c0_68 = arith.constant 0 : index
    %c0_69 = arith.constant 0 : index
    %64 = vector.load %arg10[%c0_67, %c0_68, %c0_69] : memref<2x64x128xbf16, #tpu.memory_space<vmem>>, vector<2x64x128xbf16>
    tpu.vector_store %arg10[%c0_67, %c0_68, %c0_69], %63 {strides = array<i32>} : memref<2x64x128xbf16, #tpu.memory_space<vmem>>, vector<2x64x128xbf16>,
    return
  }
  func.func @transform_0(%arg0: i32) -> (i32, i32, i32) {
    %c0_i32 = arith.constant 0 : i32
    %c0_i32_0 = arith.constant 0 : i32
    %c0_i32_1 = arith.constant 0 : i32
    return %arg0, %c0_i32, %c0_i32_0 : i32, i32, i32
  }
  func.func @transform_1(%arg0: i32) -> (i32, i32) {
    %c0_i32 = arith.constant 0 : i32
    %c0_i32_0 = arith.constant 0 : i32
    %c0_i32_1 = arith.constant 0 : i32
    return %c0_i32, %c0_i32_0 : i32, i32
  }
  func.func @transform_2(%arg0: i32) -> (i32, i32) {
    %c0_i32 = arith.constant 0 : i32
    %c0_i32_0 = arith.constant 0 : i32
    %c0_i32_1 = arith.constant 0 : i32
    return %c0_i32, %c0_i32_0 : i32, i32
  }
  func.func @transform_3(%arg0: i32) -> (i32, i32, i32) {
    %c0_i32 = arith.constant 0 : i32
    %c0_i32_0 = arith.constant 0 : i32
    %c0_i32_1 = arith.constant 0 : i32
    %c0_i32_2 = arith.constant 0 : i32
    return %c0_i32, %c0_i32_0, %c0_i32_1 : i32, i32, i32
  }
  func.func @transform_4(%arg0: i32) -> (i32, i32) {
    %c0_i32 = arith.constant 0 : i32
    %c0_i32_0 = arith.constant 0 : i32
    %c0_i32_1 = arith.constant 0 : i32
    return %c0_i32, %c0_i32_0 : i32, i32
  }
  func.func @transform_5(%arg0: i32) -> (i32, i32) {
    %c0_i32 = arith.constant 0 : i32
    %c0_i32_0 = arith.constant 0 : i32
    %c0_i32_1 = arith.constant 0 : i32
    return %c0_i32, %c0_i32_0 : i32, i32
  }
  func.func @transform_6(%arg0: i32) -> (i32, i32) {
    %c0_i32 = arith.constant 0 : i32
    %c0_i32_0 = arith.constant 0 : i32
    %c0_i32_1 = arith.constant 0 : i32
    return %c0_i32, %c0_i32_0 : i32, i32
  }
  func.func @transform_7(%arg0: i32) -> (i32, i32) {
    %c0_i32 = arith.constant 0 : i32
    %c0_i32_0 = arith.constant 0 : i32
    %c0_i32_1 = arith.constant 0 : i32
    return %c0_i32, %c0_i32_0 : i32, i32
  }
  func.func @transform_8(%arg0: i32) -> (i32, i32) {
    %c0_i32 = arith.constant 0 : i32
    %c0_i32_0 = arith.constant 0 : i32
    %c0_i32_1 = arith.constant 0 : i32
    return %c0_i32, %c0_i32_0 : i32, i32
  }
  func.func @transform_9(%arg0: i32) -> (i32, i32, i32) {
    %c0_i32 = arith.constant 0 : i32
    %c0_i32_0 = arith.constant 0 : i32
    %c0_i32_1 = arith.constant 0 : i32
    return %arg0, %c0_i32, %c0_i32_0 : i32, i32, i32
  }
}

</mosaic_0001>

<llo_original>
// kernel: tpu_custom_call.1
$region0: #{tpu_custom_call.1}
  #allocation0 [shape = 'u32[]', space=smem, size = 0x4, offset = 0x4, fixed_abs, tag = 'smem constant byte address 0x4 - core index']
  #allocation1 [shape = 'u32[144,128]{1,0:T(1,128)}', space=vmem, size = 0x12000, scoped, tag = 'internal scratch']
  #allocation2 [shape = 'bf16[2,10,16,128]{3,2,1,0:T(16,128)(2,1)}', space=vmem, size = 0x14000, scoped, tag = 'scratch operand']
  %s0 = inlined_call_operand.hbm [shape: bf16[2,64,128], index: 0, kind: input, shape index: {}]
  %s1 = inlined_call_operand.hbm [shape: bf16[128,128], index: 1, kind: input, shape index: {}]
  %s2 = inlined_call_operand.vmem [shape: f32[1,128], index: 2, kind: input, shape index: {}]
  %s3 = inlined_call_operand.hbm [shape: bf16[3,384,128], index: 3, kind: input, shape index: {}]
  %s4 = inlined_call_operand.vmem [shape: f32[1,128], index: 4, kind: input, shape index: {}]
  %s5 = inlined_call_operand.hbm [shape: bf16[128,128], index: 5, kind: input, shape index: {}]
  %s6 = inlined_call_operand.vmem [shape: f32[1,128], index: 6, kind: input, shape index: {}]
  %s7 = inlined_call_operand.hbm [shape: bf16[128,128], index: 7, kind: input, shape index: {}]
  %s8 = inlined_call_operand.vmem [shape: f32[1,128], index: 8, kind: input, shape index: {}]
  %s9 = inlined_call_operand.hbm [shape: bf16[2,64,128], index: 9, kind: output, shape index: {}]
  %s10 = sld [smem:[#allocation0]]
  $region66: #{tpu_custom_call.1} parent=0
    _
  %s12 = ssub.s32 1, %s10
  %s13 = scalar_select 0, %s12, %s10
  $region1: #{tpu_custom_call.1} parent=0
    #allocation3 [shape = 'u8[32768]{0}', space=vmem, size = 0x8000, scoped, tag = 'input window, operand 0, single buffered']
    #allocation4 [shape = 's32[1]{0}', space=sflag, size = 0x4, scoped, tag = 'scoped memory for tpu_custom_call.1']
    #allocation5 [shape = 's32[1]{0}', space=sflag, size = 0x4, scoped, tag = 'scoped memory for tpu_custom_call.1']
    #allocation6 [shape = 'u8[32768]{0}', space=vmem, size = 0x8000, scoped, tag = 'input window, operand 1, single buffered']
    #allocation7 [shape = 's32[1]{0}', space=sflag, size = 0x4, scoped, tag = 'scoped memory for tpu_custom_call.1']
    #allocation8 [shape = 'u8[294912]{0}', space=vmem, size = 0x48000, scoped, tag = 'input window, operand 3, single buffered']
    #allocation9 [shape = 'u8[32768]{0}', space=vmem, size = 0x8000, scoped, tag = 'input window, operand 5, single buffered']
    #allocation10 [shape = 's32[1]{0}', space=sflag, size = 0x4, scoped, tag = 'scoped memory for tpu_custom_call.1']
    #allocation11 [shape = 'u8[32768]{0}', space=vmem, size = 0x8000, scoped, tag = 'input window, operand 7, single buffered']
    #allocation12 [shape = 'u8[32768]{0}', space=vmem, size = 0x8000, scoped, tag = 'output window, operand 0, single buffered']
    %14 = vsyncpa [#allocation4], 0
    %15 = vsyncpa [#allocation7], 0
    %16 = vsyncpa [#allocation10], 0
    %17 = vsyncpa [#allocation5], 0
    // Predicated region
    $region2: #{tpu_custom_call.1} parent=1 // pred_check
      _
    $region3: #{tpu_custom_call.1} parent=1 // pred_check_branch
      %19 = sbr.rel (0) target = $region5
    $region4: #{tpu_custom_call.1} parent=1 // pred_region
      %s21 = ssub.s32 1024, 1024
      %22 = vsyncadd [#allocation4], %s21
      %s23 = sshll.u32 [#allocation3], 4
      %s24 = int_to_ptr.vmem [resolvable:$true] %s23
      %29 = dma.hbm_to_vmem [thread:$0]  %s0, 1024, %s24, [#allocation4], 64, 64, 4
    $region5: #{tpu_custom_call.1} parent=1 // pred_fallthru
      _
    // Predicated region
    $region6: #{tpu_custom_call.1} parent=1 // pred_check
      _
    $region7: #{tpu_custom_call.1} parent=1 // pred_check_branch
      %31 = sbr.rel (0) target = $region9
    $region8: #{tpu_custom_call.1} parent=1 // pred_region
      %s33 = ssub.s32 1024, 1024
      %34 = vsyncadd [#allocation7], %s33
      %s35 = sshll.u32 [#allocation6], 4
      %s36 = int_to_ptr.vmem [resolvable:$true] %s35
      %41 = dma.hbm_to_vmem [thread:$0]  %s1, 1024, %s36, [#allocation7], 64, 64, 4
    $region9: #{tpu_custom_call.1} parent=1 // pred_fallthru
      _
    // Predicated region
    $region10: #{tpu_custom_call.1} parent=1 // pred_check
      _
    $region11: #{tpu_custom_call.1} parent=1 // pred_check_branch
      %43 = sbr.rel (0) target = $region13
    $region12: #{tpu_custom_call.1} parent=1 // pred_region
      _
    $region13: #{tpu_custom_call.1} parent=1 // pred_fallthru
      _
    // Predicated region
    $region14: #{tpu_custom_call.1} parent=1 // pred_check
      _
    $region15: #{tpu_custom_call.1} parent=1 // pred_check_branch
      %45 = sbr.rel (0) target = $region17
    $region16: #{tpu_custom_call.1} parent=1 // pred_region
      %s47 = ssub.s32 9216, 9216
      %48 = vsyncadd [#allocation7], %s47
      %s49 = sshll.u32 [#allocation8], 4
      %s50 = int_to_ptr.vmem [resolvable:$true] %s49
      %55 = dma.hbm_to_vmem [thread:$0]  %s3, 9216, %s50, [#allocation7], 64, 64, 4
    $region17: #{tpu_custom_call.1} parent=1 // pred_fallthru
      _
    // Predicated region
    $region18: #{tpu_custom_call.1} parent=1 // pred_check
      _
    $region19: #{tpu_custom_call.1} parent=1 // pred_check_branch
      %57 = sbr.rel (0) target = $region21
    $region20: #{tpu_custom_call.1} parent=1 // pred_region
      _
    $region21: #{tpu_custom_call.1} parent=1 // pred_fallthru
      _
    // Predicated region
    $region22: #{tpu_custom_call.1} parent=1 // pred_check
      _
    $region23: #{tpu_custom_call.1} parent=1 // pred_check_branch
      %59 = sbr.rel (0) target = $region25
    $region24: #{tpu_custom_call.1} parent=1 // pred_region
      %s61 = ssub.s32 1024, 1024
      %62 = vsyncadd [#allocation10], %s61
      %s63 = sshll.u32 [#allocation9], 4
      %s64 = int_to_ptr.vmem [resolvable:$true] %s63
      %69 = dma.hbm_to_vmem [thread:$0]  %s5, 1024, %s64, [#allocation10], 64, 64, 4
    $region25: #{tpu_custom_call.1} parent=1 // pred_fallthru
      _
    // Predicated region
    $region26: #{tpu_custom_call.1} parent=1 // pred_check
      _
    $region27: #{tpu_custom_call.1} parent=1 // pred_check_branch
      %71 = sbr.rel (0) target = $region29
    $region28: #{tpu_custom_call.1} parent=1 // pred_region
      _
    $region29: #{tpu_custom_call.1} parent=1 // pred_fallthru
      _
    // Predicated region
    $region30: #{tpu_custom_call.1} parent=1 // pred_check
      _
    $region31: #{tpu_custom_call.1} parent=1 // pred_check_branch
      %73 = sbr.rel (0) target = $region33
    $region32: #{tpu_custom_call.1} parent=1 // pred_region
      %s75 = ssub.s32 1024, 1024
      %76 = vsyncadd [#allocation10], %s75
      %s77 = sshll.u32 [#allocation11], 4
      %s78 = int_to_ptr.vmem [resolvable:$true] %s77
      %83 = dma.hbm_to_vmem [thread:$0]  %s7, 1024, %s78, [#allocation10], 64, 64, 4
    $region33: #{tpu_custom_call.1} parent=1 // pred_fallthru
      _
    // Predicated region
    $region34: #{tpu_custom_call.1} parent=1 // pred_check
      _
    $region35: #{tpu_custom_call.1} parent=1 // pred_check_branch
      %85 = sbr.rel (0) target = $region37
    $region36: #{tpu_custom_call.1} parent=1 // pred_region
      _
    $region37: #{tpu_custom_call.1} parent=1 // pred_fallthru
      _
    // Predicated region
    $region38: #{tpu_custom_call.1} parent=1 // pred_check
      _
    $region39: #{tpu_custom_call.1} parent=1 // pred_check_branch
      %87 = sbr.rel (0) target = $region41
    $region40: #{tpu_custom_call.1} parent=1 // pred_region
      %88 = dma.done [#allocation4], 1024
    $region41: #{tpu_custom_call.1} parent=1 // pred_fallthru
      _
    // Predicated region
    $region42: #{tpu_custom_call.1} parent=1 // pred_check
      _
    $region43: #{tpu_custom_call.1} parent=1 // pred_check_branch
      %90 = sbr.rel (0) target = $region45
    $region44: #{tpu_custom_call.1} parent=1 // pred_region
      %91 = dma.done [#allocation7], 1024
    $region45: #{tpu_custom_call.1} parent=1 // pred_fallthru
      _
    // Predicated region
    $region46: #{tpu_custom_call.1} parent=1 // pred_check
      _
    $region47: #{tpu_custom_call.1} parent=1 // pred_check_branch
      %93 = sbr.rel (0) target = $region49
    $region48: #{tpu_custom_call.1} parent=1 // pred_region
      %94 = dma.done [#allocation7], 9216
    $region49: #{tpu_custom_call.1} parent=1 // pred_fallthru
      _
    // Predicated region
    $region50: #{tpu_custom_call.1} parent=1 // pred_check
      _
    $region51: #{tpu_custom_call.1} parent=1 // pred_check_branch
      %96 = sbr.rel (0) target = $region53
    $region52: #{tpu_custom_call.1} parent=1 // pred_region
      %97 = dma.done [#allocation10], 1024
    $region53: #{tpu_custom_call.1} parent=1 // pred_fallthru
      _
    // Predicated region
    $region54: #{tpu_custom_call.1} parent=1 // pred_check
      _
    $region55: #{tpu_custom_call.1} parent=1 // pred_check_branch
      %99 = sbr.rel (0) target = $region57
    $region56: #{tpu_custom_call.1} parent=1 // pred_region
      %100 = dma.done [#allocation10], 1024
    $region57: #{tpu_custom_call.1} parent=1 // pred_fallthru
      _
    %102 = vst [vmem:[#allocation2] sm:$0xff] 0
    %103 = vst [vmem:[#allocation2 + $0x50] sm:$0xff] 0
    %s104 = scalar_lea.vmem [#allocation2], 72
    %105 = vst [vmem:[%s104] sm:$0xff] 0
    %106 = vst [vmem:[%s104 + $0x50] sm:$0xff] 0
    %vm107 = vcmask 1040384
    %vm108 = vsmask.f32 256
    %vm109 = vmand %vm107, %vm108
    %v110 = vld [vmem:[#allocation2] sm:$0x1]
    %v111 = vsel %vm109, 0, %v110
    %112 = vst [vmem:[#allocation2] sm:$0x1] %v111
    %v113 = vld [vmem:[#allocation2 + $0x8] sm:$0x1]
    %v114 = vsel %vm109, 0, %v113
    %115 = vst [vmem:[#allocation2 + $0x8] sm:$0x1] %v114
    %v116 = vld [vmem:[#allocation2 + $0x10] sm:$0x1]
    %v117 = vsel %vm109, 0, %v116
    %118 = vst [vmem:[#allocation2 + $0x10] sm:$0x1] %v117
    %v119 = vld [vmem:[#allocation2 + $0x18] sm:$0x1]
    %v120 = vsel %vm109, 0, %v119
    %121 = vst [vmem:[#allocation2 + $0x18] sm:$0x1] %v120
    %v122 = vld [vmem:[#allocation2 + $0x20] sm:$0x1]
    %v123 = vsel %vm109, 0, %v122
    %124 = vst [vmem:[#allocation2 + $0x20] sm:$0x1] %v123
    %v125 = vld [vmem:[#allocation2 + $0x28] sm:$0x1]
    %v126 = vsel %vm109, 0, %v125
    %127 = vst [vmem:[#allocation2 + $0x28] sm:$0x1] %v126
    %v128 = vld [vmem:[#allocation2 + $0x30] sm:$0x1]
    %v129 = vsel %vm109, 0, %v128
    %130 = vst [vmem:[#allocation2 + $0x30] sm:$0x1] %v129
    %v131 = vld [vmem:[#allocation2 + $0x38] sm:$0x1]
    %v132 = vsel %vm109, 0, %v131
    %133 = vst [vmem:[#allocation2 + $0x38] sm:$0x1] %v132
    %v134 = vld [vmem:[#allocation2 + $0x40] sm:$0x1]
    %v135 = vsel %vm109, 0, %v134
    %136 = vst [vmem:[#allocation2 + $0x40] sm:$0x1] %v135
    %v137 = vld [vmem:[#allocation2 + $0x48] sm:$0x1]
    %v138 = vsel %vm109, 0, %v137
    %139 = vst [vmem:[#allocation2 + $0x48] sm:$0x1] %v138
    %v140 = vld [vmem:[#allocation2 + $0x50] sm:$0x1]
    %v141 = vsel %vm109, 0, %v140
    %142 = vst [vmem:[#allocation2 + $0x50] sm:$0x1] %v141
    %v143 = vld [vmem:[#allocation2 + $0x58] sm:$0x1]
    %v144 = vsel %vm109, 0, %v143
    %145 = vst [vmem:[#allocation2 + $0x58] sm:$0x1] %v144
    %v146 = vld [vmem:[#allocation2 + $0x60] sm:$0x1]
    %v147 = vsel %vm109, 0, %v146
    %148 = vst [vmem:[#allocation2 + $0x60] sm:$0x1] %v147
    %v149 = vld [vmem:[#allocation2 + $0x68] sm:$0x1]
    %v150 = vsel %vm109, 0, %v149
    %151 = vst [vmem:[#allocation2 + $0x68] sm:$0x1] %v150
    %v152 = vld [vmem:[#allocation2 + $0x70] sm:$0x1]
    %v153 = vsel %vm109, 0, %v152
    %154 = vst [vmem:[#allocation2 + $0x70] sm:$0x1] %v153
    %v155 = vld [vmem:[#allocation2 + $0x78] sm:$0x1]
    %v156 = vsel %vm109, 0, %v155
    %157 = vst [vmem:[#allocation2 + $0x78] sm:$0x1] %v156
    %v158 = vld [vmem:[#allocation2 + $0x80] sm:$0x1]
    %v159 = vsel %vm109, 0, %v158
    %160 = vst [vmem:[#allocation2 + $0x80] sm:$0x1] %v159
    %v161 = vld [vmem:[#allocation2 + $0x88] sm:$0x1]
    %v162 = vsel %vm109, 0, %v161
    %163 = vst [vmem:[#allocation2 + $0x88] sm:$0x1] %v162
    %v164 = vld [vmem:[#allocation2 + $0x90] sm:$0x1]
    %v165 = vsel %vm109, 0, %v164
    %166 = vst [vmem:[#allocation2 + $0x90] sm:$0x1] %v165
    %v167 = vld [vmem:[#allocation2 + $0x98] sm:$0x1]
    %v168 = vsel %vm109, 0, %v167
    %169 = vst [vmem:[#allocation2 + $0x98] sm:$0x1] %v168
    %vm170 = vcmask 1047556
    %vm171 = vsmask.f32 7954
    %vm172 = vmand %vm170, %vm171
    %v173 = vld [vmem:[#allocation2] sm:$0xf0]
    %v174 = vsel %vm172, 0, %v173
    %175 = vst [vmem:[#allocation2] sm:$0xf0] %v174
    %v176 = vld [vmem:[#allocation2 + $0x8] sm:$0xf0]
    %v177 = vsel %vm172, 0, %v176
    %178 = vst [vmem:[#allocation2 + $0x8] sm:$0xf0] %v177
    %v179 = vld [vmem:[#allocation2 + $0x10] sm:$0xf0]
    %v180 = vsel %vm172, 0, %v179
    %181 = vst [vmem:[#allocation2 + $0x10] sm:$0xf0] %v180
    %v182 = vld [vmem:[#allocation2 + $0x18] sm:$0xf0]
    %v183 = vsel %vm172, 0, %v182
    %184 = vst [vmem:[#allocation2 + $0x18] sm:$0xf0] %v183
    %v185 = vld [vmem:[#allocation2 + $0x20] sm:$0xf0]
    %v186 = vsel %vm172, 0, %v185
    %187 = vst [vmem:[#allocation2 + $0x20] sm:$0xf0] %v186
    %v188 = vld [vmem:[#allocation2 + $0x28] sm:$0xf0]
    %v189 = vsel %vm172, 0, %v188
    %190 = vst [vmem:[#allocation2 + $0x28] sm:$0xf0] %v189
    %v191 = vld [vmem:[#allocation2 + $0x30] sm:$0xf0]
    %v192 = vsel %vm172, 0, %v191
    %193 = vst [vmem:[#allocation2 + $0x30] sm:$0xf0] %v192
    %v194 = vld [vmem:[#allocation2 + $0x38] sm:$0xf0]
    %v195 = vsel %vm172, 0, %v194
    %196 = vst [vmem:[#allocation2 + $0x38] sm:$0xf0] %v195
    %v197 = vld [vmem:[#allocation2 + $0x40] sm:$0xf0]
    %v198 = vsel %vm172, 0, %v197
    %199 = vst [vmem:[#allocation2 + $0x40] sm:$0xf0] %v198
    %v200 = vld [vmem:[#allocation2 + $0x48] sm:$0xf0]
    %v201 = vsel %vm172, 0, %v200
    %202 = vst [vmem:[#allocation2 + $0x48] sm:$0xf0] %v201
    %v203 = vld [vmem:[#allocation2 + $0x50] sm:$0xf0]
    %v204 = vsel %vm172, 0, %v203
    %205 = vst [vmem:[#allocation2 + $0x50] sm:$0xf0] %v204
    %v206 = vld [vmem:[#allocation2 + $0x58] sm:$0xf0]
    %v207 = vsel %vm172, 0, %v206
    %208 = vst [vmem:[#allocation2 + $0x58] sm:$0xf0] %v207
    %v209 = vld [vmem:[#allocation2 + $0x60] sm:$0xf0]
    %v210 = vsel %vm172, 0, %v209
    %211 = vst [vmem:[#allocation2 + $0x60] sm:$0xf0] %v210
    %v212 = vld [vmem:[#allocation2 + $0x68] sm:$0xf0]
    %v213 = vsel %vm172, 0, %v212
    %214 = vst [vmem:[#allocation2 + $0x68] sm:$0xf0] %v213
    %v215 = vld [vmem:[#allocation2 + $0x70] sm:$0xf0]
    %v216 = vsel %vm172, 0, %v215
    %217 = vst [vmem:[#allocation2 + $0x70] sm:$0xf0] %v216
    %v218 = vld [vmem:[#allocation2 + $0x78] sm:$0xf0]
    %v219 = vsel %vm172, 0, %v218
    %220 = vst [vmem:[#allocation2 + $0x78] sm:$0xf0] %v219
    %v221 = vld [vmem:[#allocation2 + $0x80] sm:$0xf0]
    %v222 = vsel %vm172, 0, %v221
    %223 = vst [vmem:[#allocation2 + $0x80] sm:$0xf0] %v222
    %v224 = vld [vmem:[#allocation2 + $0x88] sm:$0xf0]
    %v225 = vsel %vm172, 0, %v224
    %226 = vst [vmem:[#allocation2 + $0x88] sm:$0xf0] %v225
    %v227 = vld [vmem:[#allocation2 + $0x90] sm:$0xf0]
    %v228 = vsel %vm172, 0, %v227
    %229 = vst [vmem:[#allocation2 + $0x90] sm:$0xf0] %v228
    %v230 = vld [vmem:[#allocation2 + $0x98] sm:$0xf0]
    %v231 = vsel %vm172, 0, %v230
    %232 = vst [vmem:[#allocation2 + $0x98] sm:$0xf0] %v231
    %v233 = vld [vmem:[#allocation3] sm:$0xf]
    %v234 = vld [vmem:[#allocation3 + $0x4] sm:$0xf]
    %v235 = vld [vmem:[#allocation3 + $0x8] sm:$0xf]
    %v236 = vld [vmem:[#allocation3 + $0xc] sm:$0xf]
    %v237 = vld [vmem:[#allocation3 + $0x10] sm:$0xf]
    %v238 = vld [vmem:[#allocation3 + $0x14] sm:$0xf]
    %v239 = vld [vmem:[#allocation3 + $0x18] sm:$0xf]
    %v240 = vld [vmem:[#allocation3 + $0x1c] sm:$0xf]
    %v241 = vld [vmem:[#allocation3 + $0x20] sm:$0xf]
    %v242 = vld [vmem:[#allocation3 + $0x24] sm:$0xf]
    %v243 = vld [vmem:[#allocation3 + $0x28] sm:$0xf]
    %v244 = vld [vmem:[#allocation3 + $0x2c] sm:$0xf]
    %v245 = vld [vmem:[#allocation3 + $0x30] sm:$0xf]
    %v246 = vld [vmem:[#allocation3 + $0x34] sm:$0xf]
    %v247 = vld [vmem:[#allocation3 + $0x38] sm:$0xf]
    %v248 = vld [vmem:[#allocation3 + $0x3c] sm:$0xf]
    %v249 = vld [vmem:[#allocation6] sm:$0xf]
    %v250 = vld [vmem:[#allocation6 + $0x4] sm:$0xf]
    %v251 = vld [vmem:[#allocation6 + $0x8] sm:$0xf]
    %v252 = vld [vmem:[#allocation6 + $0xc] sm:$0xf]
    %v253 = vld [vmem:[#allocation6 + $0x10] sm:$0xf]
    %v254 = vld [vmem:[#allocation6 + $0x14] sm:$0xf]
    %v255 = vld [vmem:[#allocation6 + $0x18] sm:$0xf]
    %v256 = vld [vmem:[#allocation6 + $0x1c] sm:$0xf]
    %v257 = vld [vmem:[#allocation6 + $0x20] sm:$0xf]
    %v258 = vld [vmem:[#allocation6 + $0x24] sm:$0xf]
    %v259 = vld [vmem:[#allocation6 + $0x28] sm:$0xf]
    %v260 = vld [vmem:[#allocation6 + $0x2c] sm:$0xf]
    %v261 = vld [vmem:[#allocation6 + $0x30] sm:$0xf]
    %v262 = vld [vmem:[#allocation6 + $0x34] sm:$0xf]
    %v263 = vld [vmem:[#allocation6 + $0x38] sm:$0xf]
    %v264 = vld [vmem:[#allocation6 + $0x3c] sm:$0xf]
    %v265 = vld [vmem:[%s2] sm:$0x1]
    %v267 = vlaneseq
    %v268 = vshrl.u32 %v267, 7
    %v269 = vsub.s32 0, %v268
    %v270 = vrot.slane %v265, %v269
    %v288 = vunpack.c.l.b16 %v233
    %v289 = vunpack.c.l.b16 %v234
    %v290 = vunpack.c.l.b16 %v235
    %v291 = vunpack.c.l.b16 %v236
    %v292 = vunpack.c.l.b16 %v237
    %v293 = vunpack.c.l.b16 %v238
    %v294 = vunpack.c.l.b16 %v239
    %v295 = vunpack.c.l.b16 %v240
    %v296 = vunpack.c.l.b16 %v241
    %v297 = vunpack.c.l.b16 %v242
    %v298 = vunpack.c.l.b16 %v243
    %v299 = vunpack.c.l.b16 %v244
    %v300 = vunpack.c.l.b16 %v245
    %v301 = vunpack.c.l.b16 %v246
    %v302 = vunpack.c.l.b16 %v247
    %v303 = vunpack.c.l.b16 %v248
    %v304 = vpack.c.b16 %v289, %v288
    %v305 = vpack.c.b16 %v291, %v290
    %v306 = vpack.c.b16 %v293, %v292
    %v307 = vpack.c.b16 %v295, %v294
    %v308 = vpack.c.b16 %v297, %v296
    %v309 = vpack.c.b16 %v299, %v298
    %v310 = vpack.c.b16 %v301, %v300
    %v311 = vpack.c.b16 %v303, %v302
    %v336 = vunpack.c.l.b16 %v249
    %v337 = vunpack.c.l.b16 %v250
    %v338 = vunpack.c.l.b16 %v251
    %v339 = vunpack.c.l.b16 %v252
    %v340 = vunpack.c.l.b16 %v253
    %v341 = vunpack.c.l.b16 %v254
    %v342 = vunpack.c.l.b16 %v255
    %v343 = vunpack.c.l.b16 %v256
    %v344 = vunpack.c.l.b16 %v257
    %v345 = vunpack.c.l.b16 %v258
    %v346 = vunpack.c.l.b16 %v259
    %v347 = vunpack.c.l.b16 %v260
    %v348 = vunpack.c.l.b16 %v261
    %v349 = vunpack.c.l.b16 %v262
    %v350 = vunpack.c.l.b16 %v263
    %v351 = vunpack.c.l.b16 %v264
    %v352 = vpack.c.b16 %v337, %v336
    %v353 = vpack.c.b16 %v339, %v338
    %v354 = vpack.c.b16 %v341, %v340
    %v355 = vpack.c.b16 %v343, %v342
    %v356 = vpack.c.b16 %v345, %v344
    %v357 = vpack.c.b16 %v347, %v346
    %v358 = vpack.c.b16 %v349, %v348
    %v359 = vpack.c.b16 %v351, %v350
    %368 = vmatprep.subr.bf16.mxu0 0
    %369 = vmatpush1.bf16.msra.mxu0 %v352
    %370 = vmatprep.subr.bf16.mxu0 0
    %371 = vmatpush1.bf16.msra.mxu0 %v353
    %372 = vmatprep.subr.bf16.mxu0 0
    %373 = vmatpush1.bf16.msra.mxu0 %v354
    %374 = vmatprep.subr.bf16.mxu0 0
    %375 = vmatpush1.bf16.msra.mxu0 %v355
    %376 = vmatprep.subr.bf16.mxu0 0
    %377 = vmatpush1.bf16.msra.mxu0 %v356
    %378 = vmatprep.subr.bf16.mxu0 0
    %379 = vmatpush1.bf16.msra.mxu0 %v357
    %380 = vmatprep.subr.bf16.mxu0 0
    %381 = vmatpush1.bf16.msra.mxu0 %v358
    %382 = vmatprep.subr.bf16.mxu0 0
    %383 = vmatpush1.bf16.msra.mxu0 %v359
    %384 = vmatprep.subr.bf16.mxu0 0
    %385 = vmatpush1.bf16.msra.mxu0 0
    %386 = vmatprep.subr.bf16.mxu0 0
    %387 = vmatpush1.bf16.msra.mxu0 0
    %388 = vmatprep.subr.bf16.mxu0 0
    %389 = vmatpush1.bf16.msra.mxu0 0
    %390 = vmatprep.subr.bf16.mxu0 0
    %391 = vmatpush1.bf16.msra.mxu0 0
    %392 = vmatprep.subr.bf16.mxu0 0
    %393 = vmatpush1.bf16.msra.mxu0 0
    %394 = vmatprep.subr.bf16.mxu0 0
    %395 = vmatpush1.bf16.msra.mxu0 0
    %396 = vmatprep.subr.bf16.mxu0 0
    %397 = vmatpush1.bf16.msra.mxu0 0
    %398 = vmatprep.subr.bf16.mxu0 0
    %399 = vmatpush1.bf16.msra.mxu0 0
    %400 = vmatprep.mubr.bf16.mxu0 0
    %401 = vmatmul.mubr.bf16.gmra.mrb[0].mxu0 %v304
    %v402 = vpop.f32.mrb[0].mxu0
    %v403 = vadd.f32 %v270, %v402
    %v404 = vpop.f32.mrb[0].mxu0
    %v405 = vpop.f32.mrb[0].mxu0
    %v406 = vadd.f32 %v270, %v405
    %v407 = vpop.f32.mrb[0].mxu0
    %408 = vmatprep.mubr.bf16.mxu0 0
    %409 = vmatmul.mubr.bf16.gmra.mrb[0].mxu0 %v305
    %v410 = vpop.f32.mrb[0].mxu0
    %v411 = vadd.f32 %v270, %v410
    %v412 = vpop.f32.mrb[0].mxu0
    %v413 = vpop.f32.mrb[0].mxu0
    %v414 = vadd.f32 %v270, %v413
    %v415 = vpop.f32.mrb[0].mxu0
    %416 = vmatprep.mubr.bf16.mxu0 0
    %417 = vmatmul.mubr.bf16.gmra.mrb[0].mxu0 %v306
    %v418 = vpop.f32.mrb[0].mxu0
    %v419 = vadd.f32 %v270, %v418
    %v420 = vpop.f32.mrb[0].mxu0
    %v421 = vpop.f32.mrb[0].mxu0
    %v422 = vadd.f32 %v270, %v421
    %v423 = vpop.f32.mrb[0].mxu0
    %424 = vmatprep.mubr.bf16.mxu0 0
    %425 = vmatmul.mubr.bf16.gmra.mrb[0].mxu0 %v307
    %v426 = vpop.f32.mrb[0].mxu0
    %v427 = vadd.f32 %v270, %v426
    %v428 = vpop.f32.mrb[0].mxu0
    %v429 = vpop.f32.mrb[0].mxu0
    %v430 = vadd.f32 %v270, %v429
    %v431 = vpop.f32.mrb[0].mxu0
    %432 = vmatprep.mubr.bf16.mxu0 0
    %433 = vmatmul.mubr.bf16.gmra.mrb[0].mxu0 %v308
    %v434 = vpop.f32.mrb[0].mxu0
    %v435 = vadd.f32 %v270, %v434
    %v436 = vpop.f32.mrb[0].mxu0
    %v437 = vpop.f32.mrb[0].mxu0
    %v438 = vadd.f32 %v270, %v437
    %v439 = vpop.f32.mrb[0].mxu0
    %440 = vmatprep.mubr.bf16.mxu0 0
    %441 = vmatmul.mubr.bf16.gmra.mrb[0].mxu0 %v309
    %v442 = vpop.f32.mrb[0].mxu0
    %v443 = vadd.f32 %v270, %v442
    %v444 = vpop.f32.mrb[0].mxu0
    %v445 = vpop.f32.mrb[0].mxu0
    %v446 = vadd.f32 %v270, %v445
    %v447 = vpop.f32.mrb[0].mxu0
    %448 = vmatprep.mubr.bf16.mxu0 0
    %449 = vmatmul.mubr.bf16.gmra.mrb[0].mxu0 %v310
    %v450 = vpop.f32.mrb[0].mxu0
    %v451 = vadd.f32 %v270, %v450
    %v452 = vpop.f32.mrb[0].mxu0
    %v453 = vpop.f32.mrb[0].mxu0
    %v454 = vadd.f32 %v270, %v453
    %v455 = vpop.f32.mrb[0].mxu0
    %456 = vmatprep.mubr.bf16.mxu0 0
    %457 = vmatmul.mubr.bf16.gmra.mrb[0].mxu0 %v311
    %v458 = vpop.f32.mrb[0].mxu0
    %v459 = vadd.f32 %v270, %v458
    %v460 = vpop.f32.mrb[0].mxu0
    %v461 = vpop.f32.mrb[0].mxu0
    %v462 = vadd.f32 %v270, %v461
    %v463 = vpop.f32.mrb[0].mxu0
    %464 = vdwg.mxu0
    %v465 = vmax.f32 %v403, 0.0
    %v466 = vmax.f32 %v406, 0.0
    %v467 = vmax.f32 %v411, 0.0
    %v468 = vmax.f32 %v414, 0.0
    %v469 = vmax.f32 %v419, 0.0
    %v470 = vmax.f32 %v422, 0.0
    %v471 = vmax.f32 %v427, 0.0
    %v472 = vmax.f32 %v430, 0.0
    %v473 = vmax.f32 %v435, 0.0
    %v474 = vmax.f32 %v438, 0.0
    %v475 = vmax.f32 %v443, 0.0
    %v476 = vmax.f32 %v446, 0.0
    %v477 = vmax.f32 %v451, 0.0
    %v478 = vmax.f32 %v454, 0.0
    %v479 = vmax.f32 %v459, 0.0
    %v480 = vmax.f32 %v462, 0.0
    %v481 = vpack.c.bf16 %v465, %v465
    %v482 = vpack.c.bf16 %v466, %v466
    %v483 = vpack.c.bf16 %v467, %v467
    %v484 = vpack.c.bf16 %v468, %v468
    %v485 = vpack.c.bf16 %v469, %v469
    %v486 = vpack.c.bf16 %v470, %v470
    %v487 = vpack.c.bf16 %v471, %v471
    %v488 = vpack.c.bf16 %v472, %v472
    %v489 = vpack.c.bf16 %v473, %v473
    %v490 = vpack.c.bf16 %v474, %v474
    %v491 = vpack.c.bf16 %v475, %v475
    %v492 = vpack.c.bf16 %v476, %v476
    %v493 = vpack.c.bf16 %v477, %v477
    %v494 = vpack.c.bf16 %v478, %v478
    %v495 = vpack.c.bf16 %v479, %v479
    %v496 = vpack.c.bf16 %v480, %v480
    %v498 = vshrl.u32 %v481, 16
    %v500 = vrot.slane %v498, 7
    %v501 = vshll.u32 %v481, 16
    %v503 = vor.u32 %v500, %v501
    %v505 = vshrl.u32 %v482, 16
    %v507 = vrot.slane %v505, 7
    %v508 = vshll.u32 %v482, 16
    %v510 = vor.u32 %v507, %v508
    %v512 = vshrl.u32 %v483, 16
    %v514 = vrot.slane %v512, 7
    %v515 = vshll.u32 %v483, 16
    %v517 = vor.u32 %v514, %v515
    %v519 = vshrl.u32 %v484, 16
    %v521 = vrot.slane %v519, 7
    %v522 = vshll.u32 %v484, 16
    %v524 = vor.u32 %v521, %v522
    %v526 = vshrl.u32 %v485, 16
    %v528 = vrot.slane %v526, 7
    %v529 = vshll.u32 %v485, 16
    %v531 = vor.u32 %v528, %v529
    %v533 = vshrl.u32 %v486, 16
    %v535 = vrot.slane %v533, 7
    %v536 = vshll.u32 %v486, 16
    %v538 = vor.u32 %v535, %v536
    %v540 = vshrl.u32 %v487, 16
    %v542 = vrot.slane %v540, 7
    %v543 = vshll.u32 %v487, 16
    %v545 = vor.u32 %v542, %v543
    %v547 = vshrl.u32 %v488, 16
    %v549 = vrot.slane %v547, 7
    %v550 = vshll.u32 %v488, 16
    %v552 = vor.u32 %v549, %v550
    %v554 = vshrl.u32 %v489, 16
    %v556 = vrot.slane %v554, 7
    %v557 = vshll.u32 %v489, 16
    %v559 = vor.u32 %v556, %v557
    %v561 = vshrl.u32 %v490, 16
    %v563 = vrot.slane %v561, 7
    %v564 = vshll.u32 %v490, 16
    %v566 = vor.u32 %v563, %v564
    %v568 = vshrl.u32 %v491, 16
    %v570 = vrot.slane %v568, 7
    %v571 = vshll.u32 %v491, 16
    %v573 = vor.u32 %v570, %v571
    %v575 = vshrl.u32 %v492, 16
    %v577 = vrot.slane %v575, 7
    %v578 = vshll.u32 %v492, 16
    %v580 = vor.u32 %v577, %v578
    %v582 = vshrl.u32 %v493, 16
    %v584 = vrot.slane %v582, 7
    %v585 = vshll.u32 %v493, 16
    %v587 = vor.u32 %v584, %v585
    %v589 = vshrl.u32 %v494, 16
    %v591 = vrot.slane %v589, 7
    %v592 = vshll.u32 %v494, 16
    %v594 = vor.u32 %v591, %v592
    %v596 = vshrl.u32 %v495, 16
    %v598 = vrot.slane %v596, 7
    %v599 = vshll.u32 %v495, 16
    %v601 = vor.u32 %v598, %v599
    %v603 = vshrl.u32 %v496, 16
    %v605 = vrot.slane %v603, 7
    %v606 = vshll.u32 %v496, 16
    %v608 = vor.u32 %v605, %v606
    %s625 = scalar_lea.vmem [#allocation2], 8
    %vm626 = vcmask 1044480
    %vm627 = vsmask.f32 4354
    %vm628 = vmand %vm626, %vm627
    %v629 = vld [vmem:[%s625] sm:$0x1f]
    %v630 = vsel %vm628, %v503, %v629
    %631 = vst [vmem:[%s625] sm:$0x1f] %v630
    %v632 = vld [vmem:[%s625 + $0x8] sm:$0x1f]
    %v633 = vsel %vm628, %v510, %v632
    %634 = vst [vmem:[%s625 + $0x8] sm:$0x1f] %v633
    %v635 = vld [vmem:[%s625 + $0x10] sm:$0x1f]
    %v636 = vsel %vm628, %v517, %v635
    %637 = vst [vmem:[%s625 + $0x10] sm:$0x1f] %v636
    %v638 = vld [vmem:[%s625 + $0x18] sm:$0x1f]
    %v639 = vsel %vm628, %v524, %v638
    %640 = vst [vmem:[%s625 + $0x18] sm:$0x1f] %v639
    %v641 = vld [vmem:[%s625 + $0x20] sm:$0x1f]
    %v642 = vsel %vm628, %v531, %v641
    %643 = vst [vmem:[%s625 + $0x20] sm:$0x1f] %v642
    %v644 = vld [vmem:[%s625 + $0x28] sm:$0x1f]
    %v645 = vsel %vm628, %v538, %v644
    %646 = vst [vmem:[%s625 + $0x28] sm:$0x1f] %v645
    %v647 = vld [vmem:[%s625 + $0x30] sm:$0x1f]
    %v648 = vsel %vm628, %v545, %v647
    %649 = vst [vmem:[%s625 + $0x30] sm:$0x1f] %v648
    %v650 = vld [vmem:[%s625 + $0x38] sm:$0x1f]
    %v651 = vsel %vm628, %v552, %v650
    %652 = vst [vmem:[%s625 + $0x38] sm:$0x1f] %v651
    %v653 = vld [vmem:[%s625 + $0x50] sm:$0x1f]
    %v654 = vsel %vm628, %v559, %v653
    %655 = vst [vmem:[%s625 + $0x50] sm:$0x1f] %v654
    %v656 = vld [vmem:[%s625 + $0x58] sm:$0x1f]
    %v657 = vsel %vm628, %v566, %v656
    %658 = vst [vmem:[%s625 + $0x58] sm:$0x1f] %v657
    %v659 = vld [vmem:[%s625 + $0x60] sm:$0x1f]
    %v660 = vsel %vm628, %v573, %v659
    %661 = vst [vmem:[%s625 + $0x60] sm:$0x1f] %v660
    %v662 = vld [vmem:[%s625 + $0x68] sm:$0x1f]
    %v663 = vsel %vm628, %v580, %v662
    %664 = vst [vmem:[%s625 + $0x68] sm:$0x1f] %v663
    %v665 = vld [vmem:[%s625 + $0x70] sm:$0x1f]
    %v666 = vsel %vm628, %v587, %v665
    %667 = vst [vmem:[%s625 + $0x70] sm:$0x1f] %v666
    %v668 = vld [vmem:[%s625 + $0x78] sm:$0x1f]
    %v669 = vsel %vm628, %v594, %v668
    %670 = vst [vmem:[%s625 + $0x78] sm:$0x1f] %v669
    %v671 = vld [vmem:[%s625 + $0x80] sm:$0x1f]
    %v672 = vsel %vm628, %v601, %v671
    %673 = vst [vmem:[%s625 + $0x80] sm:$0x1f] %v672
    %v674 = vld [vmem:[%s625 + $0x88] sm:$0x1f]
    %v675 = vsel %vm628, %v608, %v674
    %676 = vst [vmem:[%s625 + $0x88] sm:$0x1f] %v675
    %v677 = vld [vmem:[#allocation2] sm:$0xf]
    %v678 = vld [vmem:[#allocation2 + $0x8] sm:$0xf]
    %v679 = vld [vmem:[#allocation2 + $0x10] sm:$0xf]
    %v680 = vld [vmem:[#allocation2 + $0x18] sm:$0xf]
    %v681 = vld [vmem:[#allocation2 + $0x20] sm:$0xf]
    %v682 = vld [vmem:[#allocation2 + $0x28] sm:$0xf]
    %v683 = vld [vmem:[#allocation2 + $0x30] sm:$0xf]
    %v684 = vld [vmem:[#allocation2 + $0x38] sm:$0xf]
    %v685 = vld [vmem:[#allocation2 + $0x40] sm:$0xf]
    %v686 = vld [vmem:[#allocation2 + $0x48] sm:$0xf]
    %v687 = vld [vmem:[#allocation2 + $0x50] sm:$0xf]
    %v688 = vld [vmem:[#allocation2 + $0x58] sm:$0xf]
    %v689 = vld [vmem:[#allocation2 + $0x60] sm:$0xf]
    %v690 = vld [vmem:[#allocation2 + $0x68] sm:$0xf]
    %v691 = vld [vmem:[#allocation2 + $0x70] sm:$0xf]
    %v692 = vld [vmem:[#allocation2 + $0x78] sm:$0xf]
    %v693 = vld [vmem:[#allocation2 + $0x80] sm:$0xf]
    %v694 = vld [vmem:[#allocation2 + $0x88] sm:$0xf]
    %v695 = vld [vmem:[#allocation2 + $0x90] sm:$0xf]
    %v696 = vld [vmem:[#allocation2 + $0x98] sm:$0xf]
    %v697 = vld [vmem:[#allocation2] sm:$0x1f]
    %v698 = vld [vmem:[#allocation2 + $0x8] sm:$0x1f]
    %v699 = vld [vmem:[#allocation2 + $0x10] sm:$0x1f]
    %v700 = vld [vmem:[#allocation2 + $0x18] sm:$0x1f]
    %v701 = vld [vmem:[#allocation2 + $0x20] sm:$0x1f]
    %v702 = vld [vmem:[#allocation2 + $0x28] sm:$0x1f]
    %v703 = vld [vmem:[#allocation2 + $0x30] sm:$0x1f]
    %v704 = vld [vmem:[#allocation2 + $0x38] sm:$0x1f]
    %v705 = vld [vmem:[#allocation2 + $0x40] sm:$0x1f]
    %v706 = vld [vmem:[#allocation2 + $0x48] sm:$0x1f]
    %v707 = vld [vmem:[#allocation2 + $0x50] sm:$0x1f]
    %v708 = vld [vmem:[#allocation2 + $0x58] sm:$0x1f]
    %v709 = vld [vmem:[#allocation2 + $0x60] sm:$0x1f]
    %v710 = vld [vmem:[#allocation2 + $0x68] sm:$0x1f]
    %v711 = vld [vmem:[#allocation2 + $0x70] sm:$0x1f]
    %v712 = vld [vmem:[#allocation2 + $0x78] sm:$0x1f]
    %v713 = vld [vmem:[#allocation2 + $0x80] sm:$0x1f]
    %v714 = vld [vmem:[#allocation2 + $0x88] sm:$0x1f]
    %v715 = vld [vmem:[#allocation2 + $0x90] sm:$0x1f]
    %v716 = vld [vmem:[#allocation2 + $0x98] sm:$0x1f]
    %v717 = vld [vmem:[#allocation2] sm:$0x1e]
    %v718 = vld [vmem:[#allocation2 + $0x8] sm:$0x1e]
    %v719 = vld [vmem:[#allocation2 + $0x10] sm:$0x1e]
    %v720 = vld [vmem:[#allocation2 + $0x18] sm:$0x1e]
    %v721 = vld [vmem:[#allocation2 + $0x20] sm:$0x1e]
    %v722 = vld [vmem:[#allocation2 + $0x28] sm:$0x1e]
    %v723 = vld [vmem:[#allocation2 + $0x30] sm:$0x1e]
    %v724 = vld [vmem:[#allocation2 + $0x38] sm:$0x1e]
    %v725 = vld [vmem:[#allocation2 + $0x40] sm:$0x1e]
    %v726 = vld [vmem:[#allocation2 + $0x48] sm:$0x1e]
    %v727 = vld [vmem:[#allocation2 + $0x50] sm:$0x1e]
    %v728 = vld [vmem:[#allocation2 + $0x58] sm:$0x1e]
    %v729 = vld [vmem:[#allocation2 + $0x60] sm:$0x1e]
    %v730 = vld [vmem:[#allocation2 + $0x68] sm:$0x1e]
    %v731 = vld [vmem:[#allocation2 + $0x70] sm:$0x1e]
    %v732 = vld [vmem:[#allocation2 + $0x78] sm:$0x1e]
    %v733 = vld [vmem:[#allocation2 + $0x80] sm:$0x1e]
    %v734 = vld [vmem:[#allocation2 + $0x88] sm:$0x1e]
    %v735 = vld [vmem:[#allocation2 + $0x90] sm:$0x1e]
    %v736 = vld [vmem:[#allocation2 + $0x98] sm:$0x1e]
    %v738 = vshrl.u32 %v697, 16
    %v740 = vshll.u32 %v697, 16
    %v742 = vrot.slane %v740, 1
    %v743 = vor.u32 %v738, %v742
    %v745 = vshrl.u32 %v698, 16
    %v747 = vshll.u32 %v698, 16
    %v749 = vrot.slane %v747, 1
    %v750 = vor.u32 %v745, %v749
    %v752 = vshrl.u32 %v699, 16
    %v754 = vshll.u32 %v699, 16
    %v756 = vrot.slane %v754, 1
    %v757 = vor.u32 %v752, %v756
    %v759 = vshrl.u32 %v700, 16
    %v761 = vshll.u32 %v700, 16
    %v763 = vrot.slane %v761, 1
    %v764 = vor.u32 %v759, %v763
    %v766 = vshrl.u32 %v701, 16
    %v768 = vshll.u32 %v701, 16
    %v770 = vrot.slane %v768, 1
    %v771 = vor.u32 %v766, %v770
    %v773 = vshrl.u32 %v702, 16
    %v775 = vshll.u32 %v702, 16
    %v777 = vrot.slane %v775, 1
    %v778 = vor.u32 %v773, %v777
    %v780 = vshrl.u32 %v703, 16
    %v782 = vshll.u32 %v703, 16
    %v784 = vrot.slane %v782, 1
    %v785 = vor.u32 %v780, %v784
    %v787 = vshrl.u32 %v704, 16
    %v789 = vshll.u32 %v704, 16
    %v791 = vrot.slane %v789, 1
    %v792 = vor.u32 %v787, %v791
    %v794 = vshrl.u32 %v705, 16
    %v796 = vshll.u32 %v705, 16
    %v798 = vrot.slane %v796, 1
    %v799 = vor.u32 %v794, %v798
    %v801 = vshrl.u32 %v706, 16
    %v803 = vshll.u32 %v706, 16
    %v805 = vrot.slane %v803, 1
    %v806 = vor.u32 %v801, %v805
    %v808 = vshrl.u32 %v707, 16
    %v810 = vshll.u32 %v707, 16
    %v812 = vrot.slane %v810, 1
    %v813 = vor.u32 %v808, %v812
    %v815 = vshrl.u32 %v708, 16
    %v817 = vshll.u32 %v708, 16
    %v819 = vrot.slane %v817, 1
    %v820 = vor.u32 %v815, %v819
    %v822 = vshrl.u32 %v709, 16
    %v824 = vshll.u32 %v709, 16
    %v826 = vrot.slane %v824, 1
    %v827 = vor.u32 %v822, %v826
    %v829 = vshrl.u32 %v710, 16
    %v831 = vshll.u32 %v710, 16
    %v833 = vrot.slane %v831, 1
    %v834 = vor.u32 %v829, %v833
    %v836 = vshrl.u32 %v711, 16
    %v838 = vshll.u32 %v711, 16
    %v840 = vrot.slane %v838, 1
    %v841 = vor.u32 %v836, %v840
    %v843 = vshrl.u32 %v712, 16
    %v845 = vshll.u32 %v712, 16
    %v847 = vrot.slane %v845, 1
    %v848 = vor.u32 %v843, %v847
    %v850 = vshrl.u32 %v713, 16
    %v852 = vshll.u32 %v713, 16
    %v854 = vrot.slane %v852, 1
    %v855 = vor.u32 %v850, %v854
    %v857 = vshrl.u32 %v714, 16
    %v859 = vshll.u32 %v714, 16
    %v861 = vrot.slane %v859, 1
    %v862 = vor.u32 %v857, %v861
    %v864 = vshrl.u32 %v715, 16
    %v866 = vshll.u32 %v715, 16
    %v868 = vrot.slane %v866, 1
    %v869 = vor.u32 %v864, %v868
    %v871 = vshrl.u32 %v716, 16
    %v873 = vshll.u32 %v716, 16
    %v875 = vrot.slane %v873, 1
    %v876 = vor.u32 %v871, %v875
    %v897 = vrot.slane %v717, 1
    %v898 = vrot.slane %v718, 1
    %v899 = vrot.slane %v719, 1
    %v900 = vrot.slane %v720, 1
    %v901 = vrot.slane %v721, 1
    %v902 = vrot.slane %v722, 1
    %v903 = vrot.slane %v723, 1
    %v904 = vrot.slane %v724, 1
    %v905 = vrot.slane %v725, 1
    %v906 = vrot.slane %v726, 1
    %v907 = vrot.slane %v727, 1
    %v908 = vrot.slane %v728, 1
    %v909 = vrot.slane %v729, 1
    %v910 = vrot.slane %v730, 1
    %v911 = vrot.slane %v731, 1
    %v912 = vrot.slane %v732, 1
    %v913 = vrot.slane %v733, 1
    %v914 = vrot.slane %v734, 1
    %v915 = vrot.slane %v735, 1
    %v916 = vrot.slane %v736, 1
    %v933 = vunpack.c.l.b16 %v677
    %v934 = vunpack.c.l.b16 %v743
    %v935 = vunpack.c.l.b16 %v897
    %v936 = vunpack.c.l.b16 %v678
    %v937 = vunpack.c.l.b16 %v750
    %v938 = vunpack.c.l.b16 %v898
    %v939 = vunpack.c.l.b16 %v679
    %v940 = vunpack.c.l.b16 %v757
    %v941 = vunpack.c.l.b16 %v899
    %v942 = vunpack.c.l.b16 %v680
    %v943 = vunpack.c.l.b16 %v764
    %v944 = vunpack.c.l.b16 %v900
    %v945 = vunpack.c.l.b16 %v681
    %v946 = vunpack.c.l.b16 %v771
    %v947 = vunpack.c.l.b16 %v901
    %v948 = vunpack.c.l.b16 %v682
    %v949 = vunpack.c.l.b16 %v778
    %v950 = vunpack.c.l.b16 %v902
    %v951 = vunpack.c.l.b16 %v683
    %v952 = vunpack.c.l.b16 %v785
    %v953 = vunpack.c.l.b16 %v903
    %v954 = vunpack.c.l.b16 %v684
    %v955 = vunpack.c.l.b16 %v792
    %v956 = vunpack.c.l.b16 %v904
    %v957 = vunpack.c.l.b16 %v687
    %v958 = vunpack.c.l.b16 %v813
    %v959 = vunpack.c.l.b16 %v907
    %v960 = vunpack.c.l.b16 %v688
    %v961 = vunpack.c.l.b16 %v820
    %v962 = vunpack.c.l.b16 %v908
    %v963 = vunpack.c.l.b16 %v689
    %v964 = vunpack.c.l.b16 %v827
    %v965 = vunpack.c.l.b16 %v909
    %v966 = vunpack.c.l.b16 %v690
    %v967 = vunpack.c.l.b16 %v834
    %v968 = vunpack.c.l.b16 %v910
    %v969 = vunpack.c.l.b16 %v691
    %v970 = vunpack.c.l.b16 %v841
    %v971 = vunpack.c.l.b16 %v911
    %v972 = vunpack.c.l.b16 %v692
    %v973 = vunpack.c.l.b16 %v848
    %v974 = vunpack.c.l.b16 %v912
    %v975 = vunpack.c.l.b16 %v693
    %v976 = vunpack.c.l.b16 %v855
    %v977 = vunpack.c.l.b16 %v913
    %v978 = vunpack.c.l.b16 %v694
    %v979 = vunpack.c.l.b16 %v862
    %v980 = vunpack.c.l.b16 %v914
    %v981 = vld [vmem:[#allocation8] sm:$0xf]
    %v982 = vld [vmem:[#allocation8 + $0x4] sm:$0xf]
    %v983 = vld [vmem:[#allocation8 + $0x8] sm:$0xf]
    %v984 = vld [vmem:[#allocation8 + $0xc] sm:$0xf]
    %v985 = vld [vmem:[#allocation8 + $0x10] sm:$0xf]
    %v986 = vld [vmem:[#allocation8 + $0x14] sm:$0xf]
    %v987 = vld [vmem:[#allocation8 + $0x18] sm:$0xf]
    %v988 = vld [vmem:[#allocation8 + $0x1c] sm:$0xf]
    %v989 = vld [vmem:[#allocation8 + $0x20] sm:$0xf]
    %v990 = vld [vmem:[#allocation8 + $0x24] sm:$0xf]
    %v991 = vld [vmem:[#allocation8 + $0x28] sm:$0xf]
    %v992 = vld [vmem:[#allocation8 + $0x2c] sm:$0xf]
    %v993 = vld [vmem:[#allocation8 + $0x30] sm:$0xf]
    %v994 = vld [vmem:[#allocation8 + $0x34] sm:$0xf]
    %v995 = vld [vmem:[#allocation8 + $0x38] sm:$0xf]
    %v996 = vld [vmem:[#allocation8 + $0x3c] sm:$0xf]
    %v997 = vld [vmem:[#allocation8 + $0x40] sm:$0xf]
    %v998 = vld [vmem:[#allocation8 + $0x44] sm:$0xf]
    %v999 = vld [vmem:[#allocation8 + $0x48] sm:$0xf]
    %v1000 = vld [vmem:[#allocation8 + $0x4c] sm:$0xf]
    %v1001 = vld [vmem:[#allocation8 + $0x50] sm:$0xf]
    %v1002 = vld [vmem:[#allocation8 + $0x54] sm:$0xf]
    %v1003 = vld [vmem:[#allocation8 + $0x58] sm:$0xf]
    %v1004 = vld [vmem:[#allocation8 + $0x5c] sm:$0xf]
    %v1005 = vld [vmem:[#allocation8 + $0x60] sm:$0xf]
    %v1006 = vld [vmem:[#allocation8 + $0x64] sm:$0xf]
    %v1007 = vld [vmem:[#allocation8 + $0x68] sm:$0xf]
    %v1008 = vld [vmem:[#allocation8 + $0x6c] sm:$0xf]
    %v1009 = vld [vmem:[#allocation8 + $0x70] sm:$0xf]
    %v1010 = vld [vmem:[#allocation8 + $0x74] sm:$0xf]
    %v1011 = vld [vmem:[#allocation8 + $0x78] sm:$0xf]
    %v1012 = vld [vmem:[#allocation8 + $0x7c] sm:$0xf]
    %v1013 = vld [vmem:[#allocation8 + $0x80] sm:$0xf]
    %v1014 = vld [vmem:[#allocation8 + $0x84] sm:$0xf]
    %v1015 = vld [vmem:[#allocation8 + $0x88] sm:$0xf]
    %v1016 = vld [vmem:[#allocation8 + $0x8c] sm:$0xf]
    %v1017 = vld [vmem:[#allocation8 + $0x90] sm:$0xf]
    %v1018 = vld [vmem:[#allocation8 + $0x94] sm:$0xf]
    %v1019 = vld [vmem:[#allocation8 + $0x98] sm:$0xf]
    %v1020 = vld [vmem:[#allocation8 + $0x9c] sm:$0xf]
    %v1021 = vld [vmem:[#allocation8 + $0xa0] sm:$0xf]
    %v1022 = vld [vmem:[#allocation8 + $0xa4] sm:$0xf]
    %v1023 = vld [vmem:[#allocation8 + $0xa8] sm:$0xf]
    %v1024 = vld [vmem:[#allocation8 + $0xac] sm:$0xf]
    %v1025 = vld [vmem:[#allocation8 + $0xb0] sm:$0xf]
    %v1026 = vld [vmem:[#allocation8 + $0xb4] sm:$0xf]
    %v1027 = vld [vmem:[#allocation8 + $0xb8] sm:$0xf]
    %v1028 = vld [vmem:[#allocation8 + $0xbc] sm:$0xf]
    %v1031 = vunpack.c.l.b16 %v685
    %v1032 = vunpack.c.l.b16 %v799
    %v1033 = vunpack.c.l.b16 %v905
    %v1034 = vunpack.c.l.b16 %v695
    %v1035 = vunpack.c.l.b16 %v869
    %v1036 = vunpack.c.l.b16 %v915
    %s1037 = scalar_lea.vmem [#allocation8], 192
    %v1038 = vld [vmem:[%s1037] sm:$0xf]
    %v1039 = vld [vmem:[%s1037 + $0x4] sm:$0xf]
    %v1040 = vld [vmem:[%s1037 + $0x8] sm:$0xf]
    %v1041 = vld [vmem:[%s1037 + $0xc] sm:$0xf]
    %v1042 = vld [vmem:[%s1037 + $0x10] sm:$0xf]
    %v1043 = vld [vmem:[%s1037 + $0x14] sm:$0xf]
    %v1044 = vld [vmem:[%s1037 + $0x18] sm:$0xf]
    %v1045 = vld [vmem:[%s1037 + $0x1c] sm:$0xf]
    %v1046 = vld [vmem:[%s1037 + $0x20] sm:$0xf]
    %v1047 = vld [vmem:[%s1037 + $0x24] sm:$0xf]
    %v1048 = vld [vmem:[%s1037 + $0x28] sm:$0xf]
    %v1049 = vld [vmem:[%s1037 + $0x2c] sm:$0xf]
    %v1050 = vld [vmem:[%s1037 + $0x30] sm:$0xf]
    %v1051 = vld [vmem:[%s1037 + $0x34] sm:$0xf]
    %v1052 = vld [vmem:[%s1037 + $0x38] sm:$0xf]
    %v1053 = vld [vmem:[%s1037 + $0x3c] sm:$0xf]
    %v1054 = vld [vmem:[%s1037 + $0x40] sm:$0xf]
    %v1055 = vld [vmem:[%s1037 + $0x44] sm:$0xf]
    %v1056 = vld [vmem:[%s1037 + $0x48] sm:$0xf]
    %v1057 = vld [vmem:[%s1037 + $0x4c] sm:$0xf]
    %v1058 = vld [vmem:[%s1037 + $0x50] sm:$0xf]
    %v1059 = vld [vmem:[%s1037 + $0x54] sm:$0xf]
    %v1060 = vld [vmem:[%s1037 + $0x58] sm:$0xf]
    %v1061 = vld [vmem:[%s1037 + $0x5c] sm:$0xf]
    %v1062 = vld [vmem:[%s1037 + $0x60] sm:$0xf]
    %v1063 = vld [vmem:[%s1037 + $0x64] sm:$0xf]
    %v1064 = vld [vmem:[%s1037 + $0x68] sm:$0xf]
    %v1065 = vld [vmem:[%s1037 + $0x6c] sm:$0xf]
    %v1066 = vld [vmem:[%s1037 + $0x70] sm:$0xf]
    %v1067 = vld [vmem:[%s1037 + $0x74] sm:$0xf]
    %v1068 = vld [vmem:[%s1037 + $0x78] sm:$0xf]
    %v1069 = vld [vmem:[%s1037 + $0x7c] sm:$0xf]
    %v1070 = vld [vmem:[%s1037 + $0x80] sm:$0xf]
    %v1071 = vld [vmem:[%s1037 + $0x84] sm:$0xf]
    %v1072 = vld [vmem:[%s1037 + $0x88] sm:$0xf]
    %v1073 = vld [vmem:[%s1037 + $0x8c] sm:$0xf]
    %v1074 = vld [vmem:[%s1037 + $0x90] sm:$0xf]
    %v1075 = vld [vmem:[%s1037 + $0x94] sm:$0xf]
    %v1076 = vld [vmem:[%s1037 + $0x98] sm:$0xf]
    %v1077 = vld [vmem:[%s1037 + $0x9c] sm:$0xf]
    %v1078 = vld [vmem:[%s1037 + $0xa0] sm:$0xf]
    %v1079 = vld [vmem:[%s1037 + $0xa4] sm:$0xf]
    %v1080 = vld [vmem:[%s1037 + $0xa8] sm:$0xf]
    %v1081 = vld [vmem:[%s1037 + $0xac] sm:$0xf]
    %v1082 = vld [vmem:[%s1037 + $0xb0] sm:$0xf]
    %v1083 = vld [vmem:[%s1037 + $0xb4] sm:$0xf]
    %v1084 = vld [vmem:[%s1037 + $0xb8] sm:$0xf]
    %v1085 = vld [vmem:[%s1037 + $0xbc] sm:$0xf]
    %v1086 = vpack.c.b16 %v939, %v936
    %v1087 = vpack.c.b16 %v940, %v937
    %v1088 = vpack.c.b16 %v941, %v938
    %v1089 = vpack.c.b16 %v945, %v942
    %v1090 = vpack.c.b16 %v946, %v943
    %v1091 = vpack.c.b16 %v947, %v944
    %v1092 = vpack.c.b16 %v951, %v948
    %v1093 = vpack.c.b16 %v952, %v949
    %v1094 = vpack.c.b16 %v953, %v950
    %v1095 = vpack.c.b16 %v1031, %v954
    %v1096 = vpack.c.b16 %v1032, %v955
    %v1097 = vpack.c.b16 %v1033, %v956
    %v1098 = vpack.c.b16 %v963, %v960
    %v1099 = vpack.c.b16 %v964, %v961
    %v1100 = vpack.c.b16 %v965, %v962
    %v1101 = vpack.c.b16 %v969, %v966
    %v1102 = vpack.c.b16 %v970, %v967
    %v1103 = vpack.c.b16 %v971, %v968
    %v1104 = vpack.c.b16 %v975, %v972
    %v1105 = vpack.c.b16 %v976, %v973
    %v1106 = vpack.c.b16 %v977, %v974
    %v1107 = vpack.c.b16 %v1034, %v978
    %v1108 = vpack.c.b16 %v1035, %v979
    %v1109 = vpack.c.b16 %v1036, %v980
    %v1182 = vunpack.c.l.b16 %v1038
    %v1183 = vunpack.c.l.b16 %v1039
    %v1184 = vunpack.c.l.b16 %v1040
    %v1185 = vunpack.c.l.b16 %v1041
    %v1186 = vunpack.c.l.b16 %v1042
    %v1187 = vunpack.c.l.b16 %v1043
    %v1188 = vunpack.c.l.b16 %v1044
    %v1189 = vunpack.c.l.b16 %v1045
    %v1190 = vunpack.c.l.b16 %v1046
    %v1191 = vunpack.c.l.b16 %v1047
    %v1192 = vunpack.c.l.b16 %v1048
    %v1193 = vunpack.c.l.b16 %v1049
    %v1194 = vunpack.c.l.b16 %v1050
    %v1195 = vunpack.c.l.b16 %v1051
    %v1196 = vunpack.c.l.b16 %v1052
    %v1197 = vunpack.c.l.b16 %v1053
    %v1198 = vunpack.c.l.b16 %v1054
    %v1199 = vunpack.c.l.b16 %v1055
    %v1200 = vunpack.c.l.b16 %v1056
    %v1201 = vunpack.c.l.b16 %v1057
    %v1202 = vunpack.c.l.b16 %v1058
    %v1203 = vunpack.c.l.b16 %v1059
    %v1204 = vunpack.c.l.b16 %v1060
    %v1205 = vunpack.c.l.b16 %v1061
    %v1206 = vunpack.c.l.b16 %v1062
    %v1207 = vunpack.c.l.b16 %v1063
    %v1208 = vunpack.c.l.b16 %v1064
    %v1209 = vunpack.c.l.b16 %v1065
    %v1210 = vunpack.c.l.b16 %v1066
    %v1211 = vunpack.c.l.b16 %v1067
    %v1212 = vunpack.c.l.b16 %v1068
    %v1213 = vunpack.c.l.b16 %v1069
    %v1214 = vunpack.c.l.b16 %v1070
    %v1215 = vunpack.c.l.b16 %v1071
    %v1216 = vunpack.c.l.b16 %v1072
    %v1217 = vunpack.c.l.b16 %v1073
    %v1218 = vunpack.c.l.b16 %v1074
    %v1219 = vunpack.c.l.b16 %v1075
    %v1220 = vunpack.c.l.b16 %v1076
    %v1221 = vunpack.c.l.b16 %v1077
    %v1222 = vunpack.c.l.b16 %v1078
    %v1223 = vunpack.c.l.b16 %v1079
    %v1224 = vunpack.c.l.b16 %v1080
    %v1225 = vunpack.c.l.b16 %v1081
    %v1226 = vunpack.c.l.b16 %v1082
    %v1227 = vunpack.c.l.b16 %v1083
    %v1228 = vunpack.c.l.b16 %v1084
    %v1229 = vunpack.c.l.b16 %v1085
    %v1230 = vpack.c.b16 %v1183, %v1182
    %v1231 = vpack.c.b16 %v1185, %v1184
    %v1232 = vpack.c.b16 %v1187, %v1186
    %v1233 = vpack.c.b16 %v1189, %v1188
    %v1234 = vpack.c.b16 %v1191, %v1190
    %v1235 = vpack.c.b16 %v1193, %v1192
    %v1236 = vpack.c.b16 %v1195, %v1194
    %v1237 = vpack.c.b16 %v1197, %v1196
    %v1238 = vpack.c.b16 %v1199, %v1198
    %v1239 = vpack.c.b16 %v1201, %v1200
    %v1240 = vpack.c.b16 %v1203, %v1202
    %v1241 = vpack.c.b16 %v1205, %v1204
    %v1242 = vpack.c.b16 %v1207, %v1206
    %v1243 = vpack.c.b16 %v1209, %v1208
    %v1244 = vpack.c.b16 %v1211, %v1210
    %v1245 = vpack.c.b16 %v1213, %v1212
    %v1246 = vpack.c.b16 %v1215, %v1214
    %v1247 = vpack.c.b16 %v1217, %v1216
    %v1248 = vpack.c.b16 %v1219, %v1218
    %v1249 = vpack.c.b16 %v1221, %v1220
    %v1250 = vpack.c.b16 %v1223, %v1222
    %v1251 = vpack.c.b16 %v1225, %v1224
    %v1252 = vpack.c.b16 %v1227, %v1226
    %v1253 = vpack.c.b16 %v1229, %v1228
    %1278 = vmatprep.subr.bf16.mxu0 0
    %1279 = vmatpush1.bf16.msra.mxu0 %v1230
    %1280 = vmatprep.subr.bf16.mxu0 0
    %1281 = vmatpush1.bf16.msra.mxu0 %v1231
    %1282 = vmatprep.subr.bf16.mxu0 0
    %1283 = vmatpush1.bf16.msra.mxu0 %v1232
    %1284 = vmatprep.subr.bf16.mxu0 0
    %1285 = vmatpush1.bf16.msra.mxu0 %v1233
    %1286 = vmatprep.subr.bf16.mxu0 0
    %1287 = vmatpush1.bf16.msra.mxu0 %v1234
    %1288 = vmatprep.subr.bf16.mxu0 0
    %1289 = vmatpush1.bf16.msra.mxu0 %v1235
    %1290 = vmatprep.subr.bf16.mxu0 0
    %1291 = vmatpush1.bf16.msra.mxu0 %v1236
    %1292 = vmatprep.subr.bf16.mxu0 0
    %1293 = vmatpush1.bf16.msra.mxu0 %v1237
    %1294 = vmatprep.subr.bf16.mxu0 0
    %1295 = vmatpush1.bf16.msra.mxu0 %v1238
    %1296 = vmatprep.subr.bf16.mxu0 0
    %1297 = vmatpush1.bf16.msra.mxu0 %v1239
    %1298 = vmatprep.subr.bf16.mxu0 0
    %1299 = vmatpush1.bf16.msra.mxu0 %v1240
    %1300 = vmatprep.subr.bf16.mxu0 0
    %1301 = vmatpush1.bf16.msra.mxu0 %v1241
    %1302 = vmatprep.subr.bf16.mxu0 0
    %1303 = vmatpush1.bf16.msra.mxu0 %v1242
    %1304 = vmatprep.subr.bf16.mxu0 0
    %1305 = vmatpush1.bf16.msra.mxu0 %v1243
    %1306 = vmatprep.subr.bf16.mxu0 0
    %1307 = vmatpush1.bf16.msra.mxu0 %v1244
    %1308 = vmatprep.subr.bf16.mxu0 0
    %1309 = vmatpush1.bf16.msra.mxu0 %v1245
    %1310 = vmatprep.mubr.bf16.mxu0 %v1087
    %1311 = vmatmul.mubr.bf16.gmra.mrb[0].mxu0 %v1086
    %v1312 = vpop.f32.mrb[0].mxu0
    %v1313 = vadd.f32 0.0, %v1312
    %v1314 = vpop.f32.mrb[0].mxu0
    %v1315 = vpop.f32.mrb[0].mxu0
    %v1316 = vadd.f32 0.0, %v1315
    %v1317 = vpop.f32.mrb[0].mxu0
    %1318 = vmatprep.mubr.bf16.mxu0 %v1090
    %1319 = vmatmul.mubr.bf16.gmra.mrb[0].mxu0 %v1089
    %v1320 = vpop.f32.mrb[0].mxu0
    %v1321 = vadd.f32 0.0, %v1320
    %v1322 = vpop.f32.mrb[0].mxu0
    %v1323 = vpop.f32.mrb[0].mxu0
    %v1324 = vadd.f32 0.0, %v1323
    %v1325 = vpop.f32.mrb[0].mxu0
    %1326 = vmatprep.mubr.bf16.mxu0 %v1093
    %1327 = vmatmul.mubr.bf16.gmra.mrb[0].mxu0 %v1092
    %v1328 = vpop.f32.mrb[0].mxu0
    %v1329 = vadd.f32 0.0, %v1328
    %v1330 = vpop.f32.mrb[0].mxu0
    %v1331 = vpop.f32.mrb[0].mxu0
    %v1332 = vadd.f32 0.0, %v1331
    %v1333 = vpop.f32.mrb[0].mxu0
    %1334 = vmatprep.mubr.bf16.mxu0 %v1096
    %1335 = vmatmul.mubr.bf16.gmra.mrb[0].mxu0 %v1095
    %v1336 = vpop.f32.mrb[0].mxu0
    %v1337 = vadd.f32 0.0, %v1336
    %v1338 = vpop.f32.mrb[0].mxu0
    %v1339 = vpop.f32.mrb[0].mxu0
    %v1340 = vadd.f32 0.0, %v1339
    %v1341 = vpop.f32.mrb[0].mxu0
    %1342 = vmatprep.mubr.bf16.mxu0 %v1099
    %1343 = vmatmul.mubr.bf16.gmra.mrb[0].mxu0 %v1098
    %v1344 = vpop.f32.mrb[0].mxu0
    %v1345 = vadd.f32 0.0, %v1344
    %v1346 = vpop.f32.mrb[0].mxu0
    %v1347 = vpop.f32.mrb[0].mxu0
    %v1348 = vadd.f32 0.0, %v1347
    %v1349 = vpop.f32.mrb[0].mxu0
    %1350 = vmatprep.mubr.bf16.mxu0 %v1102
    %1351 = vmatmul.mubr.bf16.gmra.mrb[0].mxu0 %v1101
    %v1352 = vpop.f32.mrb[0].mxu0
    %v1353 = vadd.f32 0.0, %v1352
    %v1354 = vpop.f32.mrb[0].mxu0
    %v1355 = vpop.f32.mrb[0].mxu0
    %v1356 = vadd.f32 0.0, %v1355
    %v1357 = vpop.f32.mrb[0].mxu0
    %1358 = vmatprep.mubr.bf16.mxu0 %v1105
    %1359 = vmatmul.mubr.bf16.gmra.mrb[0].mxu0 %v1104
    %v1360 = vpop.f32.mrb[0].mxu0
    %v1361 = vadd.f32 0.0, %v1360
    %v1362 = vpop.f32.mrb[0].mxu0
    %v1363 = vpop.f32.mrb[0].mxu0
    %v1364 = vadd.f32 0.0, %v1363
    %v1365 = vpop.f32.mrb[0].mxu0
    %1366 = vmatprep.mubr.bf16.mxu0 %v1108
    %1367 = vmatmul.mubr.bf16.gmra.mrb[0].mxu0 %v1107
    %v1368 = vpop.f32.mrb[0].mxu0
    %v1369 = vadd.f32 0.0, %v1368
    %v1370 = vpop.f32.mrb[0].mxu0
    %v1371 = vpop.f32.mrb[0].mxu0
    %v1372 = vadd.f32 0.0, %v1371
    %v1373 = vpop.f32.mrb[0].mxu0
    %1374 = vdwg.mxu0
    %1375 = vmatprep.subr.bf16.mxu0 0
    %1376 = vmatpush1.bf16.msra.mxu0 %v1246
    %1377 = vmatprep.subr.bf16.mxu0 0
    %1378 = vmatpush1.bf16.msra.mxu0 %v1247
    %1379 = vmatprep.subr.bf16.mxu0 0
    %1380 = vmatpush1.bf16.msra.mxu0 %v1248
    %1381 = vmatprep.subr.bf16.mxu0 0
    %1382 = vmatpush1.bf16.msra.mxu0 %v1249
    %1383 = vmatprep.subr.bf16.mxu0 0
    %1384 = vmatpush1.bf16.msra.mxu0 %v1250
    %1385 = vmatprep.subr.bf16.mxu0 0
    %1386 = vmatpush1.bf16.msra.mxu0 %v1251
    %1387 = vmatprep.subr.bf16.mxu0 0
    %1388 = vmatpush1.bf16.msra.mxu0 %v1252
    %1389 = vmatprep.subr.bf16.mxu0 0
    %1390 = vmatpush1.bf16.msra.mxu0 %v1253
    %1391 = vmatprep.subr.bf16.mxu0 0
    %1392 = vmatpush1.bf16.msra.mxu0 0
    %1393 = vmatprep.subr.bf16.mxu0 0
    %1394 = vmatpush1.bf16.msra.mxu0 0
    %1395 = vmatprep.subr.bf16.mxu0 0
    %1396 = vmatpush1.bf16.msra.mxu0 0
    %1397 = vmatprep.subr.bf16.mxu0 0
    %1398 = vmatpush1.bf16.msra.mxu0 0
    %1399 = vmatprep.subr.bf16.mxu0 0
    %1400 = vmatpush1.bf16.msra.mxu0 0
    %1401 = vmatprep.subr.bf16.mxu0 0
    %1402 = vmatpush1.bf16.msra.mxu0 0
    %1403 = vmatprep.subr.bf16.mxu0 0
    %1404 = vmatpush1.bf16.msra.mxu0 0
    %1405 = vmatprep.subr.bf16.mxu0 0
    %1406 = vmatpush1.bf16.msra.mxu0 0
    %1407 = vmatprep.mubr.bf16.mxu0 0
    %1408 = vmatmul.mubr.bf16.gmra.mrb[0].mxu0 %v1088
    %v1409 = vpop.f32.mrb[0].mxu0
    %v1410 = vadd.f32 %v1313, %v1409
    %v1411 = vpop.f32.mrb[0].mxu0
    %v1412 = vpop.f32.mrb[0].mxu0
    %v1413 = vadd.f32 %v1316, %v1412
    %v1414 = vpop.f32.mrb[0].mxu0
    %1415 = vmatprep.mubr.bf16.mxu0 0
    %1416 = vmatmul.mubr.bf16.gmra.mrb[0].mxu0 %v1091
    %v1417 = vpop.f32.mrb[0].mxu0
    %v1418 = vadd.f32 %v1321, %v1417
    %v1419 = vpop.f32.mrb[0].mxu0
    %v1420 = vpop.f32.mrb[0].mxu0
    %v1421 = vadd.f32 %v1324, %v1420
    %v1422 = vpop.f32.mrb[0].mxu0
    %1423 = vmatprep.mubr.bf16.mxu0 0
    %1424 = vmatmul.mubr.bf16.gmra.mrb[0].mxu0 %v1094
    %v1425 = vpop.f32.mrb[0].mxu0
    %v1426 = vadd.f32 %v1329, %v1425
    %v1427 = vpop.f32.mrb[0].mxu0
    %v1428 = vpop.f32.mrb[0].mxu0
    %v1429 = vadd.f32 %v1332, %v1428
    %v1430 = vpop.f32.mrb[0].mxu0
    %1431 = vmatprep.mubr.bf16.mxu0 0
    %1432 = vmatmul.mubr.bf16.gmra.mrb[0].mxu0 %v1097
    %v1433 = vpop.f32.mrb[0].mxu0
    %v1434 = vadd.f32 %v1337, %v1433
    %v1435 = vpop.f32.mrb[0].mxu0
    %v1436 = vpop.f32.mrb[0].mxu0
    %v1437 = vadd.f32 %v1340, %v1436
    %v1438 = vpop.f32.mrb[0].mxu0
    %1439 = vmatprep.mubr.bf16.mxu0 0
    %1440 = vmatmul.mubr.bf16.gmra.mrb[0].mxu0 %v1100
    %v1441 = vpop.f32.mrb[0].mxu0
    %v1442 = vadd.f32 %v1345, %v1441
    %v1443 = vpop.f32.mrb[0].mxu0
    %v1444 = vpop.f32.mrb[0].mxu0
    %v1445 = vadd.f32 %v1348, %v1444
    %v1446 = vpop.f32.mrb[0].mxu0
    %1447 = vmatprep.mubr.bf16.mxu0 0
    %1448 = vmatmul.mubr.bf16.gmra.mrb[0].mxu0 %v1103
    %v1449 = vpop.f32.mrb[0].mxu0
    %v1450 = vadd.f32 %v1353, %v1449
    %v1451 = vpop.f32.mrb[0].mxu0
    %v1452 = vpop.f32.mrb[0].mxu0
    %v1453 = vadd.f32 %v1356, %v1452
    %v1454 = vpop.f32.mrb[0].mxu0
    %1455 = vmatprep.mubr.bf16.mxu0 0
    %1456 = vmatmul.mubr.bf16.gmra.mrb[0].mxu0 %v1106
    %v1457 = vpop.f32.mrb[0].mxu0
    %v1458 = vadd.f32 %v1361, %v1457
    %v1459 = vpop.f32.mrb[0].mxu0
    %v1460 = vpop.f32.mrb[0].mxu0
    %v1461 = vadd.f32 %v1364, %v1460
    %v1462 = vpop.f32.mrb[0].mxu0
    %1463 = vmatprep.mubr.bf16.mxu0 0
    %1464 = vmatmul.mubr.bf16.gmra.mrb[0].mxu0 %v1109
    %v1465 = vpop.f32.mrb[0].mxu0
    %v1466 = vadd.f32 %v1369, %v1465
    %v1467 = vpop.f32.mrb[0].mxu0
    %v1468 = vpop.f32.mrb[0].mxu0
    %v1469 = vadd.f32 %v1372, %v1468
    %v1470 = vpop.f32.mrb[0].mxu0
    %1471 = vdwg.mxu0
    %v1472 = vpack.c.b16 %v936, %v933
    %v1473 = vpack.c.b16 %v937, %v934
    %v1474 = vpack.c.b16 %v938, %v935
    %v1475 = vpack.c.b16 %v942, %v939
    %v1476 = vpack.c.b16 %v943, %v940
    %v1477 = vpack.c.b16 %v944, %v941
    %v1478 = vpack.c.b16 %v948, %v945
    %v1479 = vpack.c.b16 %v949, %v946
    %v1480 = vpack.c.b16 %v950, %v947
    %v1481 = vpack.c.b16 %v954, %v951
    %v1482 = vpack.c.b16 %v955, %v952
    %v1483 = vpack.c.b16 %v956, %v953
    %v1484 = vpack.c.b16 %v960, %v957
    %v1485 = vpack.c.b16 %v961, %v958
    %v1486 = vpack.c.b16 %v962, %v959
    %v1487 = vpack.c.b16 %v966, %v963
    %v1488 = vpack.c.b16 %v967, %v964
    %v1489 = vpack.c.b16 %v968, %v965
    %v1490 = vpack.c.b16 %v972, %v969
    %v1491 = vpack.c.b16 %v973, %v970
    %v1492 = vpack.c.b16 %v974, %v971
    %v1493 = vpack.c.b16 %v978, %v975
    %v1494 = vpack.c.b16 %v979, %v976
    %v1495 = vpack.c.b16 %v980, %v977
    %v1568 = vunpack.c.l.b16 %v981
    %v1569 = vunpack.c.l.b16 %v982
    %v1570 = vunpack.c.l.b16 %v983
    %v1571 = vunpack.c.l.b16 %v984
    %v1572 = vunpack.c.l.b16 %v985
    %v1573 = vunpack.c.l.b16 %v986
    %v1574 = vunpack.c.l.b16 %v987
    %v1575 = vunpack.c.l.b16 %v988
    %v1576 = vunpack.c.l.b16 %v989
    %v1577 = vunpack.c.l.b16 %v990
    %v1578 = vunpack.c.l.b16 %v991
    %v1579 = vunpack.c.l.b16 %v992
    %v1580 = vunpack.c.l.b16 %v993
    %v1581 = vunpack.c.l.b16 %v994
    %v1582 = vunpack.c.l.b16 %v995
    %v1583 = vunpack.c.l.b16 %v996
    %v1584 = vunpack.c.l.b16 %v997
    %v1585 = vunpack.c.l.b16 %v998
    %v1586 = vunpack.c.l.b16 %v999
    %v1587 = vunpack.c.l.b16 %v1000
    %v1588 = vunpack.c.l.b16 %v1001
    %v1589 = vunpack.c.l.b16 %v1002
    %v1590 = vunpack.c.l.b16 %v1003
    %v1591 = vunpack.c.l.b16 %v1004
    %v1592 = vunpack.c.l.b16 %v1005
    %v1593 = vunpack.c.l.b16 %v1006
    %v1594 = vunpack.c.l.b16 %v1007
    %v1595 = vunpack.c.l.b16 %v1008
    %v1596 = vunpack.c.l.b16 %v1009
    %v1597 = vunpack.c.l.b16 %v1010
    %v1598 = vunpack.c.l.b16 %v1011
    %v1599 = vunpack.c.l.b16 %v1012
    %v1600 = vunpack.c.l.b16 %v1013
    %v1601 = vunpack.c.l.b16 %v1014
    %v1602 = vunpack.c.l.b16 %v1015
    %v1603 = vunpack.c.l.b16 %v1016
    %v1604 = vunpack.c.l.b16 %v1017
    %v1605 = vunpack.c.l.b16 %v1018
    %v1606 = vunpack.c.l.b16 %v1019
    %v1607 = vunpack.c.l.b16 %v1020
    %v1608 = vunpack.c.l.b16 %v1021
    %v1609 = vunpack.c.l.b16 %v1022
    %v1610 = vunpack.c.l.b16 %v1023
    %v1611 = vunpack.c.l.b16 %v1024
    %v1612 = vunpack.c.l.b16 %v1025
    %v1613 = vunpack.c.l.b16 %v1026
    %v1614 = vunpack.c.l.b16 %v1027
    %v1615 = vunpack.c.l.b16 %v1028
    %v1616 = vpack.c.b16 %v1569, %v1568
    %v1617 = vpack.c.b16 %v1571, %v1570
    %v1618 = vpack.c.b16 %v1573, %v1572
    %v1619 = vpack.c.b16 %v1575, %v1574
    %v1620 = vpack.c.b16 %v1577, %v1576
    %v1621 = vpack.c.b16 %v1579, %v1578
    %v1622 = vpack.c.b16 %v1581, %v1580
    %v1623 = vpack.c.b16 %v1583, %v1582
    %v1624 = vpack.c.b16 %v1585, %v1584
    %v1625 = vpack.c.b16 %v1587, %v1586
    %v1626 = vpack.c.b16 %v1589, %v1588
    %v1627 = vpack.c.b16 %v1591, %v1590
    %v1628 = vpack.c.b16 %v1593, %v1592
    %v1629 = vpack.c.b16 %v1595, %v1594
    %v1630 = vpack.c.b16 %v1597, %v1596
    %v1631 = vpack.c.b16 %v1599, %v1598
    %v1632 = vpack.c.b16 %v1601, %v1600
    %v1633 = vpack.c.b16 %v1603, %v1602
    %v1634 = vpack.c.b16 %v1605, %v1604
    %v1635 = vpack.c.b16 %v1607, %v1606
    %v1636 = vpack.c.b16 %v1609, %v1608
    %v1637 = vpack.c.b16 %v1611, %v1610
    %v1638 = vpack.c.b16 %v1613, %v1612
    %v1639 = vpack.c.b16 %v1615, %v1614
    %1664 = vmatprep.subr.bf16.mxu0 0
    %1665 = vmatpush1.bf16.msra.mxu0 %v1616
    %1666 = vmatprep.subr.bf16.mxu0 0
    %1667 = vmatpush1.bf16.msra.mxu0 %v1617
    %1668 = vmatprep.subr.bf16.mxu0 0
    %1669 = vmatpush1.bf16.msra.mxu0 %v1618
    %1670 = vmatprep.subr.bf16.mxu0 0
    %1671 = vmatpush1.bf16.msra.mxu0 %v1619
    %1672 = vmatprep.subr.bf16.mxu0 0
    %1673 = vmatpush1.bf16.msra.mxu0 %v1620
    %1674 = vmatprep.subr.bf16.mxu0 0
    %1675 = vmatpush1.bf16.msra.mxu0 %v1621
    %1676 = vmatprep.subr.bf16.mxu0 0
    %1677 = vmatpush1.bf16.msra.mxu0 %v1622
    %1678 = vmatprep.subr.bf16.mxu0 0
    %1679 = vmatpush1.bf16.msra.mxu0 %v1623
    %1680 = vmatprep.subr.bf16.mxu0 0
    %1681 = vmatpush1.bf16.msra.mxu0 %v1624
    %1682 = vmatprep.subr.bf16.mxu0 0
    %1683 = vmatpush1.bf16.msra.mxu0 %v1625
    %1684 = vmatprep.subr.bf16.mxu0 0
    %1685 = vmatpush1.bf16.msra.mxu0 %v1626
    %1686 = vmatprep.subr.bf16.mxu0 0
    %1687 = vmatpush1.bf16.msra.mxu0 %v1627
    %1688 = vmatprep.subr.bf16.mxu0 0
    %1689 = vmatpush1.bf16.msra.mxu0 %v1628
    %1690 = vmatprep.subr.bf16.mxu0 0
    %1691 = vmatpush1.bf16.msra.mxu0 %v1629
    %1692 = vmatprep.subr.bf16.mxu0 0
    %1693 = vmatpush1.bf16.msra.mxu0 %v1630
    %1694 = vmatprep.subr.bf16.mxu0 0
    %1695 = vmatpush1.bf16.msra.mxu0 %v1631
    %1696 = vmatprep.mubr.bf16.mxu0 %v1473
    %1697 = vmatmul.mubr.bf16.gmra.mrb[0].mxu0 %v1472
    %v1698 = vpop.f32.mrb[0].mxu0
    %v1699 = vadd.f32 %v1410, %v1698
    %v1700 = vpop.f32.mrb[0].mxu0
    %v1701 = vpop.f32.mrb[0].mxu0
    %v1702 = vadd.f32 %v1413, %v1701
    %v1703 = vpop.f32.mrb[0].mxu0
    %1704 = vmatprep.mubr.bf16.mxu0 %v1476
    %1705 = vmatmul.mubr.bf16.gmra.mrb[0].mxu0 %v1475
    %v1706 = vpop.f32.mrb[0].mxu0
    %v1707 = vadd.f32 %v1418, %v1706
    %v1708 = vpop.f32.mrb[0].mxu0
    %v1709 = vpop.f32.mrb[0].mxu0
    %v1710 = vadd.f32 %v1421, %v1709
    %v1711 = vpop.f32.mrb[0].mxu0
    %1712 = vmatprep.mubr.bf16.mxu0 %v1479
    %1713 = vmatmul.mubr.bf16.gmra.mrb[0].mxu0 %v1478
    %v1714 = vpop.f32.mrb[0].mxu0
    %v1715 = vadd.f32 %v1426, %v1714
    %v1716 = vpop.f32.mrb[0].mxu0
    %v1717 = vpop.f32.mrb[0].mxu0
    %v1718 = vadd.f32 %v1429, %v1717
    %v1719 = vpop.f32.mrb[0].mxu0
    %1720 = vmatprep.mubr.bf16.mxu0 %v1482
    %1721 = vmatmul.mubr.bf16.gmra.mrb[0].mxu0 %v1481
    %v1722 = vpop.f32.mrb[0].mxu0
    %v1723 = vadd.f32 %v1434, %v1722
    %v1724 = vpop.f32.mrb[0].mxu0
    %v1725 = vpop.f32.mrb[0].mxu0
    %v1726 = vadd.f32 %v1437, %v1725
    %v1727 = vpop.f32.mrb[0].mxu0
    %1728 = vmatprep.mubr.bf16.mxu0 %v1485
    %1729 = vmatmul.mubr.bf16.gmra.mrb[0].mxu0 %v1484
    %v1730 = vpop.f32.mrb[0].mxu0
    %v1731 = vadd.f32 %v1442, %v1730
    %v1732 = vpop.f32.mrb[0].mxu0
    %v1733 = vpop.f32.mrb[0].mxu0
    %v1734 = vadd.f32 %v1445, %v1733
    %v1735 = vpop.f32.mrb[0].mxu0
    %1736 = vmatprep.mubr.bf16.mxu0 %v1488
    %1737 = vmatmul.mubr.bf16.gmra.mrb[0].mxu0 %v1487
    %v1738 = vpop.f32.mrb[0].mxu0
    %v1739 = vadd.f32 %v1450, %v1738
    %v1740 = vpop.f32.mrb[0].mxu0
    %v1741 = vpop.f32.mrb[0].mxu0
    %v1742 = vadd.f32 %v1453, %v1741
    %v1743 = vpop.f32.mrb[0].mxu0
    %1744 = vmatprep.mubr.bf16.mxu0 %v1491
    %1745 = vmatmul.mubr.bf16.gmra.mrb[0].mxu0 %v1490
    %v1746 = vpop.f32.mrb[0].mxu0
    %v1747 = vadd.f32 %v1458, %v1746
    %v1748 = vpop.f32.mrb[0].mxu0
    %v1749 = vpop.f32.mrb[0].mxu0
    %v1750 = vadd.f32 %v1461, %v1749
    %v1751 = vpop.f32.mrb[0].mxu0
    %1752 = vmatprep.mubr.bf16.mxu0 %v1494
    %1753 = vmatmul.mubr.bf16.gmra.mrb[0].mxu0 %v1493
    %v1754 = vpop.f32.mrb[0].mxu0
    %v1755 = vadd.f32 %v1466, %v1754
    %v1756 = vpop.f32.mrb[0].mxu0
    %v1757 = vpop.f32.mrb[0].mxu0
    %v1758 = vadd.f32 %v1469, %v1757
    %v1759 = vpop.f32.mrb[0].mxu0
    %1760 = vdwg.mxu0
    %1761 = vmatprep.subr.bf16.mxu0 0
    %1762 = vmatpush1.bf16.msra.mxu0 %v1632
    %1763 = vmatprep.subr.bf16.mxu0 0
    %1764 = vmatpush1.bf16.msra.mxu0 %v1633
    %1765 = vmatprep.subr.bf16.mxu0 0
    %1766 = vmatpush1.bf16.msra.mxu0 %v1634
    %1767 = vmatprep.subr.bf16.mxu0 0
    %1768 = vmatpush1.bf16.msra.mxu0 %v1635
    %1769 = vmatprep.subr.bf16.mxu0 0
    %1770 = vmatpush1.bf16.msra.mxu0 %v1636
    %1771 = vmatprep.subr.bf16.mxu0 0
    %1772 = vmatpush1.bf16.msra.mxu0 %v1637
    %1773 = vmatprep.subr.bf16.mxu0 0
    %1774 = vmatpush1.bf16.msra.mxu0 %v1638
    %1775 = vmatprep.subr.bf16.mxu0 0
    %1776 = vmatpush1.bf16.msra.mxu0 %v1639
    %1777 = vmatprep.subr.bf16.mxu0 0
    %1778 = vmatpush1.bf16.msra.mxu0 0
    %1779 = vmatprep.subr.bf16.mxu0 0
    %1780 = vmatpush1.bf16.msra.mxu0 0
    %1781 = vmatprep.subr.bf16.mxu0 0
    %1782 = vmatpush1.bf16.msra.mxu0 0
    %1783 = vmatprep.subr.bf16.mxu0 0
    %1784 = vmatpush1.bf16.msra.mxu0 0
    %1785 = vmatprep.subr.bf16.mxu0 0
    %1786 = vmatpush1.bf16.msra.mxu0 0
    %1787 = vmatprep.subr.bf16.mxu0 0
    %1788 = vmatpush1.bf16.msra.mxu0 0
    %1789 = vmatprep.subr.bf16.mxu0 0
    %1790 = vmatpush1.bf16.msra.mxu0 0
    %1791 = vmatprep.subr.bf16.mxu0 0
    %1792 = vmatpush1.bf16.msra.mxu0 0
    %1793 = vmatprep.mubr.bf16.mxu0 0
    %1794 = vmatmul.mubr.bf16.gmra.mrb[0].mxu0 %v1474
    %v1795 = vpop.f32.mrb[0].mxu0
    %v1796 = vadd.f32 %v1699, %v1795
    %v1797 = vpop.f32.mrb[0].mxu0
    %v1798 = vpop.f32.mrb[0].mxu0
    %v1799 = vadd.f32 %v1702, %v1798
    %v1800 = vpop.f32.mrb[0].mxu0
    %1801 = vmatprep.mubr.bf16.mxu0 0
    %1802 = vmatmul.mubr.bf16.gmra.mrb[0].mxu0 %v1477
    %v1803 = vpop.f32.mrb[0].mxu0
    %v1804 = vadd.f32 %v1707, %v1803
    %v1805 = vpop.f32.mrb[0].mxu0
    %v1806 = vpop.f32.mrb[0].mxu0
    %v1807 = vadd.f32 %v1710, %v1806
    %v1808 = vpop.f32.mrb[0].mxu0
    %1809 = vmatprep.mubr.bf16.mxu0 0
    %1810 = vmatmul.mubr.bf16.gmra.mrb[0].mxu0 %v1480
    %v1811 = vpop.f32.mrb[0].mxu0
    %v1812 = vadd.f32 %v1715, %v1811
    %v1813 = vpop.f32.mrb[0].mxu0
    %v1814 = vpop.f32.mrb[0].mxu0
    %v1815 = vadd.f32 %v1718, %v1814
    %v1816 = vpop.f32.mrb[0].mxu0
    %1817 = vmatprep.mubr.bf16.mxu0 0
    %1818 = vmatmul.mubr.bf16.gmra.mrb[0].mxu0 %v1483
    %v1819 = vpop.f32.mrb[0].mxu0
    %v1820 = vadd.f32 %v1723, %v1819
    %v1821 = vpop.f32.mrb[0].mxu0
    %v1822 = vpop.f32.mrb[0].mxu0
    %v1823 = vadd.f32 %v1726, %v1822
    %v1824 = vpop.f32.mrb[0].mxu0
    %1825 = vmatprep.mubr.bf16.mxu0 0
    %1826 = vmatmul.mubr.bf16.gmra.mrb[0].mxu0 %v1486
    %v1827 = vpop.f32.mrb[0].mxu0
    %v1828 = vadd.f32 %v1731, %v1827
    %v1829 = vpop.f32.mrb[0].mxu0
    %v1830 = vpop.f32.mrb[0].mxu0
    %v1831 = vadd.f32 %v1734, %v1830
    %v1832 = vpop.f32.mrb[0].mxu0
    %1833 = vmatprep.mubr.bf16.mxu0 0
    %1834 = vmatmul.mubr.bf16.gmra.mrb[0].mxu0 %v1489
    %v1835 = vpop.f32.mrb[0].mxu0
    %v1836 = vadd.f32 %v1739, %v1835
    %v1837 = vpop.f32.mrb[0].mxu0
    %v1838 = vpop.f32.mrb[0].mxu0
    %v1839 = vadd.f32 %v1742, %v1838
    %v1840 = vpop.f32.mrb[0].mxu0
    %1841 = vmatprep.mubr.bf16.mxu0 0
    %1842 = vmatmul.mubr.bf16.gmra.mrb[0].mxu0 %v1492
    %v1843 = vpop.f32.mrb[0].mxu0
    %v1844 = vadd.f32 %v1747, %v1843
    %v1845 = vpop.f32.mrb[0].mxu0
    %v1846 = vpop.f32.mrb[0].mxu0
    %v1847 = vadd.f32 %v1750, %v1846
    %v1848 = vpop.f32.mrb[0].mxu0
    %1849 = vmatprep.mubr.bf16.mxu0 0
    %1850 = vmatmul.mubr.bf16.gmra.mrb[0].mxu0 %v1495
    %v1851 = vpop.f32.mrb[0].mxu0
    %v1852 = vadd.f32 %v1755, %v1851
    %v1853 = vpop.f32.mrb[0].mxu0
    %v1854 = vpop.f32.mrb[0].mxu0
    %v1855 = vadd.f32 %v1758, %v1854
    %v1856 = vpop.f32.mrb[0].mxu0
    %1857 = vdwg.mxu0
    %v1860 = vunpack.c.l.b16 %v686
    %v1861 = vunpack.c.l.b16 %v806
    %v1862 = vunpack.c.l.b16 %v906
    %v1863 = vunpack.c.l.b16 %v696
    %v1864 = vunpack.c.l.b16 %v876
    %v1865 = vunpack.c.l.b16 %v916
    %s1866 = scalar_lea.vmem [#allocation8], 384
    %v1867 = vld [vmem:[%s1866] sm:$0xf]
    %v1868 = vld [vmem:[%s1866 + $0x4] sm:$0xf]
    %v1869 = vld [vmem:[%s1866 + $0x8] sm:$0xf]
    %v1870 = vld [vmem:[%s1866 + $0xc] sm:$0xf]
    %v1871 = vld [vmem:[%s1866 + $0x10] sm:$0xf]
    %v1872 = vld [vmem:[%s1866 + $0x14] sm:$0xf]
    %v1873 = vld [vmem:[%s1866 + $0x18] sm:$0xf]
    %v1874 = vld [vmem:[%s1866 + $0x1c] sm:$0xf]
    %v1875 = vld [vmem:[%s1866 + $0x20] sm:$0xf]
    %v1876 = vld [vmem:[%s1866 + $0x24] sm:$0xf]
    %v1877 = vld [vmem:[%s1866 + $0x28] sm:$0xf]
    %v1878 = vld [vmem:[%s1866 + $0x2c] sm:$0xf]
    %v1879 = vld [vmem:[%s1866 + $0x30] sm:$0xf]
    %v1880 = vld [vmem:[%s1866 + $0x34] sm:$0xf]
    %v1881 = vld [vmem:[%s1866 + $0x38] sm:$0xf]
    %v1882 = vld [vmem:[%s1866 + $0x3c] sm:$0xf]
    %v1883 = vld [vmem:[%s1866 + $0x40] sm:$0xf]
    %v1884 = vld [vmem:[%s1866 + $0x44] sm:$0xf]
    %v1885 = vld [vmem:[%s1866 + $0x48] sm:$0xf]
    %v1886 = vld [vmem:[%s1866 + $0x4c] sm:$0xf]
    %v1887 = vld [vmem:[%s1866 + $0x50] sm:$0xf]
    %v1888 = vld [vmem:[%s1866 + $0x54] sm:$0xf]
    %v1889 = vld [vmem:[%s1866 + $0x58] sm:$0xf]
    %v1890 = vld [vmem:[%s1866 + $0x5c] sm:$0xf]
    %v1891 = vld [vmem:[%s1866 + $0x60] sm:$0xf]
    %v1892 = vld [vmem:[%s1866 + $0x64] sm:$0xf]
    %v1893 = vld [vmem:[%s1866 + $0x68] sm:$0xf]
    %v1894 = vld [vmem:[%s1866 + $0x6c] sm:$0xf]
    %v1895 = vld [vmem:[%s1866 + $0x70] sm:$0xf]
    %v1896 = vld [vmem:[%s1866 + $0x74] sm:$0xf]
    %v1897 = vld [vmem:[%s1866 + $0x78] sm:$0xf]
    %v1898 = vld [vmem:[%s1866 + $0x7c] sm:$0xf]
    %v1899 = vld [vmem:[%s1866 + $0x80] sm:$0xf]
    %v1900 = vld [vmem:[%s1866 + $0x84] sm:$0xf]
    %v1901 = vld [vmem:[%s1866 + $0x88] sm:$0xf]
    %v1902 = vld [vmem:[%s1866 + $0x8c] sm:$0xf]
    %v1903 = vld [vmem:[%s1866 + $0x90] sm:$0xf]
    %v1904 = vld [vmem:[%s1866 + $0x94] sm:$0xf]
    %v1905 = vld [vmem:[%s1866 + $0x98] sm:$0xf]
    %v1906 = vld [vmem:[%s1866 + $0x9c] sm:$0xf]
    %v1907 = vld [vmem:[%s1866 + $0xa0] sm:$0xf]
    %v1908 = vld [vmem:[%s1866 + $0xa4] sm:$0xf]
    %v1909 = vld [vmem:[%s1866 + $0xa8] sm:$0xf]
    %v1910 = vld [vmem:[%s1866 + $0xac] sm:$0xf]
    %v1911 = vld [vmem:[%s1866 + $0xb0] sm:$0xf]
    %v1912 = vld [vmem:[%s1866 + $0xb4] sm:$0xf]
    %v1913 = vld [vmem:[%s1866 + $0xb8] sm:$0xf]
    %v1914 = vld [vmem:[%s1866 + $0xbc] sm:$0xf]
    %v1915 = vpack.c.b16 %v1860, %v1031
    %v1916 = vpack.c.b16 %v1861, %v1032
    %v1917 = vpack.c.b16 %v1862, %v1033
    %v1918 = vpack.c.b16 %v1863, %v1034
    %v1919 = vpack.c.b16 %v1864, %v1035
    %v1920 = vpack.c.b16 %v1865, %v1036
    %v1975 = vunpack.c.l.b16 %v1867
    %v1976 = vunpack.c.l.b16 %v1868
    %v1977 = vunpack.c.l.b16 %v1869
    %v1978 = vunpack.c.l.b16 %v1870
    %v1979 = vunpack.c.l.b16 %v1871
    %v1980 = vunpack.c.l.b16 %v1872
    %v1981 = vunpack.c.l.b16 %v1873
    %v1982 = vunpack.c.l.b16 %v1874
    %v1983 = vunpack.c.l.b16 %v1875
    %v1984 = vunpack.c.l.b16 %v1876
    %v1985 = vunpack.c.l.b16 %v1877
    %v1986 = vunpack.c.l.b16 %v1878
    %v1987 = vunpack.c.l.b16 %v1879
    %v1988 = vunpack.c.l.b16 %v1880
    %v1989 = vunpack.c.l.b16 %v1881
    %v1990 = vunpack.c.l.b16 %v1882
    %v1991 = vunpack.c.l.b16 %v1883
    %v1992 = vunpack.c.l.b16 %v1884
    %v1993 = vunpack.c.l.b16 %v1885
    %v1994 = vunpack.c.l.b16 %v1886
    %v1995 = vunpack.c.l.b16 %v1887
    %v1996 = vunpack.c.l.b16 %v1888
    %v1997 = vunpack.c.l.b16 %v1889
    %v1998 = vunpack.c.l.b16 %v1890
    %v1999 = vunpack.c.l.b16 %v1891
    %v2000 = vunpack.c.l.b16 %v1892
    %v2001 = vunpack.c.l.b16 %v1893
    %v2002 = vunpack.c.l.b16 %v1894
    %v2003 = vunpack.c.l.b16 %v1895
    %v2004 = vunpack.c.l.b16 %v1896
    %v2005 = vunpack.c.l.b16 %v1897
    %v2006 = vunpack.c.l.b16 %v1898
    %v2007 = vunpack.c.l.b16 %v1899
    %v2008 = vunpack.c.l.b16 %v1900
    %v2009 = vunpack.c.l.b16 %v1901
    %v2010 = vunpack.c.l.b16 %v1902
    %v2011 = vunpack.c.l.b16 %v1903
    %v2012 = vunpack.c.l.b16 %v1904
    %v2013 = vunpack.c.l.b16 %v1905
    %v2014 = vunpack.c.l.b16 %v1906
    %v2015 = vunpack.c.l.b16 %v1907
    %v2016 = vunpack.c.l.b16 %v1908
    %v2017 = vunpack.c.l.b16 %v1909
    %v2018 = vunpack.c.l.b16 %v1910
    %v2019 = vunpack.c.l.b16 %v1911
    %v2020 = vunpack.c.l.b16 %v1912
    %v2021 = vunpack.c.l.b16 %v1913
    %v2022 = vunpack.c.l.b16 %v1914
    %v2023 = vpack.c.b16 %v1976, %v1975
    %v2024 = vpack.c.b16 %v1978, %v1977
    %v2025 = vpack.c.b16 %v1980, %v1979
    %v2026 = vpack.c.b16 %v1982, %v1981
    %v2027 = vpack.c.b16 %v1984, %v1983
    %v2028 = vpack.c.b16 %v1986, %v1985
    %v2029 = vpack.c.b16 %v1988, %v1987
    %v2030 = vpack.c.b16 %v1990, %v1989
    %v2031 = vpack.c.b16 %v1992, %v1991
    %v2032 = vpack.c.b16 %v1994, %v1993
    %v2033 = vpack.c.b16 %v1996, %v1995
    %v2034 = vpack.c.b16 %v1998, %v1997
    %v2035 = vpack.c.b16 %v2000, %v1999
    %v2036 = vpack.c.b16 %v2002, %v2001
    %v2037 = vpack.c.b16 %v2004, %v2003
    %v2038 = vpack.c.b16 %v2006, %v2005
    %v2039 = vpack.c.b16 %v2008, %v2007
    %v2040 = vpack.c.b16 %v2010, %v2009
    %v2041 = vpack.c.b16 %v2012, %v2011
    %v2042 = vpack.c.b16 %v2014, %v2013
    %v2043 = vpack.c.b16 %v2016, %v2015
    %v2044 = vpack.c.b16 %v2018, %v2017
    %v2045 = vpack.c.b16 %v2020, %v2019
    %v2046 = vpack.c.b16 %v2022, %v2021
    %2071 = vmatprep.subr.bf16.mxu0 0
    %2072 = vmatpush1.bf16.msra.mxu0 %v2023
    %2073 = vmatprep.subr.bf16.mxu0 0
    %2074 = vmatpush1.bf16.msra.mxu0 %v2024
    %2075 = vmatprep.subr.bf16.mxu0 0
    %2076 = vmatpush1.bf16.msra.mxu0 %v2025
    %2077 = vmatprep.subr.bf16.mxu0 0
    %2078 = vmatpush1.bf16.msra.mxu0 %v2026
    %2079 = vmatprep.subr.bf16.mxu0 0
    %2080 = vmatpush1.bf16.msra.mxu0 %v2027
    %2081 = vmatprep.subr.bf16.mxu0 0
    %2082 = vmatpush1.bf16.msra.mxu0 %v2028
    %2083 = vmatprep.subr.bf16.mxu0 0
    %2084 = vmatpush1.bf16.msra.mxu0 %v2029
    %2085 = vmatprep.subr.bf16.mxu0 0
    %2086 = vmatpush1.bf16.msra.mxu0 %v2030
    %2087 = vmatprep.subr.bf16.mxu0 0
    %2088 = vmatpush1.bf16.msra.mxu0 %v2031
    %2089 = vmatprep.subr.bf16.mxu0 0
    %2090 = vmatpush1.bf16.msra.mxu0 %v2032
    %2091 = vmatprep.subr.bf16.mxu0 0
    %2092 = vmatpush1.bf16.msra.mxu0 %v2033
    %2093 = vmatprep.subr.bf16.mxu0 0
    %2094 = vmatpush1.bf16.msra.mxu0 %v2034
    %2095 = vmatprep.subr.bf16.mxu0 0
    %2096 = vmatpush1.bf16.msra.mxu0 %v2035
    %2097 = vmatprep.subr.bf16.mxu0 0
    %2098 = vmatpush1.bf16.msra.mxu0 %v2036
    %2099 = vmatprep.subr.bf16.mxu0 0
    %2100 = vmatpush1.bf16.msra.mxu0 %v2037
    %2101 = vmatprep.subr.bf16.mxu0 0
    %2102 = vmatpush1.bf16.msra.mxu0 %v2038
    %2103 = vmatprep.mubr.bf16.mxu0 %v1476
    %2104 = vmatmul.mubr.bf16.gmra.mrb[0].mxu0 %v1475
    %v2105 = vpop.f32.mrb[0].mxu0
    %v2106 = vadd.f32 0.0, %v2105
    %v2107 = vpop.f32.mrb[0].mxu0
    %v2108 = vpop.f32.mrb[0].mxu0
    %v2109 = vadd.f32 0.0, %v2108
    %v2110 = vpop.f32.mrb[0].mxu0
    %2111 = vmatprep.mubr.bf16.mxu0 %v1479
    %2112 = vmatmul.mubr.bf16.gmra.mrb[0].mxu0 %v1478
    %v2113 = vpop.f32.mrb[0].mxu0
    %v2114 = vadd.f32 0.0, %v2113
    %v2115 = vpop.f32.mrb[0].mxu0
    %v2116 = vpop.f32.mrb[0].mxu0
    %v2117 = vadd.f32 0.0, %v2116
    %v2118 = vpop.f32.mrb[0].mxu0
    %2119 = vmatprep.mubr.bf16.mxu0 %v1482
    %2120 = vmatmul.mubr.bf16.gmra.mrb[0].mxu0 %v1481
    %v2121 = vpop.f32.mrb[0].mxu0
    %v2122 = vadd.f32 0.0, %v2121
    %v2123 = vpop.f32.mrb[0].mxu0
    %v2124 = vpop.f32.mrb[0].mxu0
    %v2125 = vadd.f32 0.0, %v2124
    %v2126 = vpop.f32.mrb[0].mxu0
    %2127 = vmatprep.mubr.bf16.mxu0 %v1916
    %2128 = vmatmul.mubr.bf16.gmra.mrb[0].mxu0 %v1915
    %v2129 = vpop.f32.mrb[0].mxu0
    %v2130 = vadd.f32 0.0, %v2129
    %v2131 = vpop.f32.mrb[0].mxu0
    %v2132 = vpop.f32.mrb[0].mxu0
    %v2133 = vadd.f32 0.0, %v2132
    %v2134 = vpop.f32.mrb[0].mxu0
    %2135 = vmatprep.mubr.bf16.mxu0 %v1488
    %2136 = vmatmul.mubr.bf16.gmra.mrb[0].mxu0 %v1487
    %v2137 = vpop.f32.mrb[0].mxu0
    %v2138 = vadd.f32 0.0, %v2137
    %v2139 = vpop.f32.mrb[0].mxu0
    %v2140 = vpop.f32.mrb[0].mxu0
    %v2141 = vadd.f32 0.0, %v2140
    %v2142 = vpop.f32.mrb[0].mxu0
    %2143 = vmatprep.mubr.bf16.mxu0 %v1491
    %2144 = vmatmul.mubr.bf16.gmra.mrb[0].mxu0 %v1490
    %v2145 = vpop.f32.mrb[0].mxu0
    %v2146 = vadd.f32 0.0, %v2145
    %v2147 = vpop.f32.mrb[0].mxu0
    %v2148 = vpop.f32.mrb[0].mxu0
    %v2149 = vadd.f32 0.0, %v2148
    %v2150 = vpop.f32.mrb[0].mxu0
    %2151 = vmatprep.mubr.bf16.mxu0 %v1494
    %2152 = vmatmul.mubr.bf16.gmra.mrb[0].mxu0 %v1493
    %v2153 = vpop.f32.mrb[0].mxu0
    %v2154 = vadd.f32 0.0, %v2153
    %v2155 = vpop.f32.mrb[0].mxu0
    %v2156 = vpop.f32.mrb[0].mxu0
    %v2157 = vadd.f32 0.0, %v2156
    %v2158 = vpop.f32.mrb[0].mxu0
    %2159 = vmatprep.mubr.bf16.mxu0 %v1919
    %2160 = vmatmul.mubr.bf16.gmra.mrb[0].mxu0 %v1918
    %v2161 = vpop.f32.mrb[0].mxu0
    %v2162 = vadd.f32 0.0, %v2161
    %v2163 = vpop.f32.mrb[0].mxu0
    %v2164 = vpop.f32.mrb[0].mxu0
    %v2165 = vadd.f32 0.0, %v2164
    %v2166 = vpop.f32.mrb[0].mxu0
    %2167 = vdwg.mxu0
    %2168 = vmatprep.subr.bf16.mxu0 0
    %2169 = vmatpush1.bf16.msra.mxu0 %v2039
    %2170 = vmatprep.subr.bf16.mxu0 0
    %2171 = vmatpush1.bf16.msra.mxu0 %v2040
    %2172 = vmatprep.subr.bf16.mxu0 0
    %2173 = vmatpush1.bf16.msra.mxu0 %v2041
    %2174 = vmatprep.subr.bf16.mxu0 0
    %2175 = vmatpush1.bf16.msra.mxu0 %v2042
    %2176 = vmatprep.subr.bf16.mxu0 0
    %2177 = vmatpush1.bf16.msra.mxu0 %v2043
    %2178 = vmatprep.subr.bf16.mxu0 0
    %2179 = vmatpush1.bf16.msra.mxu0 %v2044
    %2180 = vmatprep.subr.bf16.mxu0 0
    %2181 = vmatpush1.bf16.msra.mxu0 %v2045
    %2182 = vmatprep.subr.bf16.mxu0 0
    %2183 = vmatpush1.bf16.msra.mxu0 %v2046
    %2184 = vmatprep.subr.bf16.mxu0 0
    %2185 = vmatpush1.bf16.msra.mxu0 0
    %2186 = vmatprep.subr.bf16.mxu0 0
    %2187 = vmatpush1.bf16.msra.mxu0 0
    %2188 = vmatprep.subr.bf16.mxu0 0
    %2189 = vmatpush1.bf16.msra.mxu0 0
    %2190 = vmatprep.subr.bf16.mxu0 0
    %2191 = vmatpush1.bf16.msra.mxu0 0
    %2192 = vmatprep.subr.bf16.mxu0 0
    %2193 = vmatpush1.bf16.msra.mxu0 0
    %2194 = vmatprep.subr.bf16.mxu0 0
    %2195 = vmatpush1.bf16.msra.mxu0 0
    %2196 = vmatprep.subr.bf16.mxu0 0
    %2197 = vmatpush1.bf16.msra.mxu0 0
    %2198 = vmatprep.subr.bf16.mxu0 0
    %2199 = vmatpush1.bf16.msra.mxu0 0
    %2200 = vmatprep.mubr.bf16.mxu0 0
    %2201 = vmatmul.mubr.bf16.gmra.mrb[0].mxu0 %v1477
    %v2202 = vpop.f32.mrb[0].mxu0
    %v2203 = vadd.f32 %v2106, %v2202
    %v2204 = vpop.f32.mrb[0].mxu0
    %v2205 = vpop.f32.mrb[0].mxu0
    %v2206 = vadd.f32 %v2109, %v2205
    %v2207 = vpop.f32.mrb[0].mxu0
    %2208 = vmatprep.mubr.bf16.mxu0 0
    %2209 = vmatmul.mubr.bf16.gmra.mrb[0].mxu0 %v1480
    %v2210 = vpop.f32.mrb[0].mxu0
    %v2211 = vadd.f32 %v2114, %v2210
    %v2212 = vpop.f32.mrb[0].mxu0
    %v2213 = vpop.f32.mrb[0].mxu0
    %v2214 = vadd.f32 %v2117, %v2213
    %v2215 = vpop.f32.mrb[0].mxu0
    %2216 = vmatprep.mubr.bf16.mxu0 0
    %2217 = vmatmul.mubr.bf16.gmra.mrb[0].mxu0 %v1483
    %v2218 = vpop.f32.mrb[0].mxu0
    %v2219 = vadd.f32 %v2122, %v2218
    %v2220 = vpop.f32.mrb[0].mxu0
    %v2221 = vpop.f32.mrb[0].mxu0
    %v2222 = vadd.f32 %v2125, %v2221
    %v2223 = vpop.f32.mrb[0].mxu0
    %2224 = vmatprep.mubr.bf16.mxu0 0
    %2225 = vmatmul.mubr.bf16.gmra.mrb[0].mxu0 %v1917
    %v2226 = vpop.f32.mrb[0].mxu0
    %v2227 = vadd.f32 %v2130, %v2226
    %v2228 = vpop.f32.mrb[0].mxu0
    %v2229 = vpop.f32.mrb[0].mxu0
    %v2230 = vadd.f32 %v2133, %v2229
    %v2231 = vpop.f32.mrb[0].mxu0
    %2232 = vmatprep.mubr.bf16.mxu0 0
    %2233 = vmatmul.mubr.bf16.gmra.mrb[0].mxu0 %v1489
    %v2234 = vpop.f32.mrb[0].mxu0
    %v2235 = vadd.f32 %v2138, %v2234
    %v2236 = vpop.f32.mrb[0].mxu0
    %v2237 = vpop.f32.mrb[0].mxu0
    %v2238 = vadd.f32 %v2141, %v2237
    %v2239 = vpop.f32.mrb[0].mxu0
    %2240 = vmatprep.mubr.bf16.mxu0 0
    %2241 = vmatmul.mubr.bf16.gmra.mrb[0].mxu0 %v1492
    %v2242 = vpop.f32.mrb[0].mxu0
    %v2243 = vadd.f32 %v2146, %v2242
    %v2244 = vpop.f32.mrb[0].mxu0
    %v2245 = vpop.f32.mrb[0].mxu0
    %v2246 = vadd.f32 %v2149, %v2245
    %v2247 = vpop.f32.mrb[0].mxu0
    %2248 = vmatprep.mubr.bf16.mxu0 0
    %2249 = vmatmul.mubr.bf16.gmra.mrb[0].mxu0 %v1495
    %v2250 = vpop.f32.mrb[0].mxu0
    %v2251 = vadd.f32 %v2154, %v2250
    %v2252 = vpop.f32.mrb[0].mxu0
    %v2253 = vpop.f32.mrb[0].mxu0
    %v2254 = vadd.f32 %v2157, %v2253
    %v2255 = vpop.f32.mrb[0].mxu0
    %2256 = vmatprep.mubr.bf16.mxu0 0
    %2257 = vmatmul.mubr.bf16.gmra.mrb[0].mxu0 %v1920
    %v2258 = vpop.f32.mrb[0].mxu0
    %v2259 = vadd.f32 %v2162, %v2258
    %v2260 = vpop.f32.mrb[0].mxu0
    %v2261 = vpop.f32.mrb[0].mxu0
    %v2262 = vadd.f32 %v2165, %v2261
    %v2263 = vpop.f32.mrb[0].mxu0
    %2264 = vdwg.mxu0
    %v2265 = vadd.f32 %v1796, %v2203
    %v2266 = vadd.f32 %v1799, %v2206
    %v2267 = vadd.f32 %v1804, %v2211
    %v2268 = vadd.f32 %v1807, %v2214
    %v2269 = vadd.f32 %v1812, %v2219
    %v2270 = vadd.f32 %v1815, %v2222
    %v2271 = vadd.f32 %v1820, %v2227
    %v2272 = vadd.f32 %v1823, %v2230
    %v2273 = vadd.f32 %v1828, %v2235
    %v2274 = vadd.f32 %v1831, %v2238
    %v2275 = vadd.f32 %v1836, %v2243
    %v2276 = vadd.f32 %v1839, %v2246
    %v2277 = vadd.f32 %v1844, %v2251
    %v2278 = vadd.f32 %v1847, %v2254
    %v2279 = vadd.f32 %v1852, %v2259
    %v2280 = vadd.f32 %v1855, %v2262
    %v2281 = vld [vmem:[%s4] sm:$0x1]
    %v2283 = vlaneseq
    %v2284 = vshrl.u32 %v2283, 7
    %v2285 = vsub.s32 0, %v2284
    %v2286 = vrot.slane %v2281, %v2285
    %v2288 = vadd.f32 %v2265, %v2286
    %v2289 = vadd.f32 %v2266, %v2286
    %v2290 = vadd.f32 %v2267, %v2286
    %v2291 = vadd.f32 %v2268, %v2286
    %v2292 = vadd.f32 %v2269, %v2286
    %v2293 = vadd.f32 %v2270, %v2286
    %v2294 = vadd.f32 %v2271, %v2286
    %v2295 = vadd.f32 %v2272, %v2286
    %v2296 = vadd.f32 %v2273, %v2286
    %v2297 = vadd.f32 %v2274, %v2286
    %v2298 = vadd.f32 %v2275, %v2286
    %v2299 = vadd.f32 %v2276, %v2286
    %v2300 = vadd.f32 %v2277, %v2286
    %v2301 = vadd.f32 %v2278, %v2286
    %v2302 = vadd.f32 %v2279, %v2286
    %v2303 = vadd.f32 %v2280, %v2286
    %v2304 = vmax.f32 %v2288, 0.0
    %v2305 = vmax.f32 %v2289, 0.0
    %v2306 = vmax.f32 %v2290, 0.0
    %v2307 = vmax.f32 %v2291, 0.0
    %v2308 = vmax.f32 %v2292, 0.0
    %v2309 = vmax.f32 %v2293, 0.0
    %v2310 = vmax.f32 %v2294, 0.0
    %v2311 = vmax.f32 %v2295, 0.0
    %v2312 = vmax.f32 %v2296, 0.0
    %v2313 = vmax.f32 %v2297, 0.0
    %v2314 = vmax.f32 %v2298, 0.0
    %v2315 = vmax.f32 %v2299, 0.0
    %v2316 = vmax.f32 %v2300, 0.0
    %v2317 = vmax.f32 %v2301, 0.0
    %v2318 = vmax.f32 %v2302, 0.0
    %v2319 = vmax.f32 %v2303, 0.0
    %v2320 = vpack.c.bf16 %v2305, %v2304
    %v2321 = vpack.c.bf16 %v2307, %v2306
    %v2322 = vpack.c.bf16 %v2309, %v2308
    %v2323 = vpack.c.bf16 %v2311, %v2310
    %v2324 = vpack.c.bf16 %v2313, %v2312
    %v2325 = vpack.c.bf16 %v2315, %v2314
    %v2326 = vpack.c.bf16 %v2317, %v2316
    %v2327 = vpack.c.bf16 %v2319, %v2318
    %v2328 = vld [vmem:[#allocation11] sm:$0xf]
    %v2329 = vld [vmem:[#allocation11 + $0x4] sm:$0xf]
    %v2330 = vld [vmem:[#allocation11 + $0x8] sm:$0xf]
    %v2331 = vld [vmem:[#allocation11 + $0xc] sm:$0xf]
    %v2332 = vld [vmem:[#allocation11 + $0x10] sm:$0xf]
    %v2333 = vld [vmem:[#allocation11 + $0x14] sm:$0xf]
    %v2334 = vld [vmem:[#allocation11 + $0x18] sm:$0xf]
    %v2335 = vld [vmem:[#allocation11 + $0x1c] sm:$0xf]
    %v2336 = vld [vmem:[#allocation11 + $0x20] sm:$0xf]
    %v2337 = vld [vmem:[#allocation11 + $0x24] sm:$0xf]
    %v2338 = vld [vmem:[#allocation11 + $0x28] sm:$0xf]
    %v2339 = vld [vmem:[#allocation11 + $0x2c] sm:$0xf]
    %v2340 = vld [vmem:[#allocation11 + $0x30] sm:$0xf]
    %v2341 = vld [vmem:[#allocation11 + $0x34] sm:$0xf]
    %v2342 = vld [vmem:[#allocation11 + $0x38] sm:$0xf]
    %v2343 = vld [vmem:[#allocation11 + $0x3c] sm:$0xf]
    %v2344 = vld [vmem:[%s8] sm:$0x1]
    %v2346 = vlaneseq
    %v2347 = vshrl.u32 %v2346, 7
    %v2348 = vsub.s32 0, %v2347
    %v2349 = vrot.slane %v2344, %v2348
    %v2367 = vunpack.c.l.b16 %v2328
    %v2368 = vunpack.c.l.b16 %v2329
    %v2369 = vunpack.c.l.b16 %v2330
    %v2370 = vunpack.c.l.b16 %v2331
    %v2371 = vunpack.c.l.b16 %v2332
    %v2372 = vunpack.c.l.b16 %v2333
    %v2373 = vunpack.c.l.b16 %v2334
    %v2374 = vunpack.c.l.b16 %v2335
    %v2375 = vunpack.c.l.b16 %v2336
    %v2376 = vunpack.c.l.b16 %v2337
    %v2377 = vunpack.c.l.b16 %v2338
    %v2378 = vunpack.c.l.b16 %v2339
    %v2379 = vunpack.c.l.b16 %v2340
    %v2380 = vunpack.c.l.b16 %v2341
    %v2381 = vunpack.c.l.b16 %v2342
    %v2382 = vunpack.c.l.b16 %v2343
    %v2383 = vpack.c.b16 %v2368, %v2367
    %v2384 = vpack.c.b16 %v2370, %v2369
    %v2385 = vpack.c.b16 %v2372, %v2371
    %v2386 = vpack.c.b16 %v2374, %v2373
    %v2387 = vpack.c.b16 %v2376, %v2375
    %v2388 = vpack.c.b16 %v2378, %v2377
    %v2389 = vpack.c.b16 %v2380, %v2379
    %v2390 = vpack.c.b16 %v2382, %v2381
    %2399 = vmatprep.subr.bf16.mxu0 0
    %2400 = vmatpush1.bf16.msra.mxu0 %v2383
    %2401 = vmatprep.subr.bf16.mxu0 0
    %2402 = vmatpush1.bf16.msra.mxu0 %v2384
    %2403 = vmatprep.subr.bf16.mxu0 0
    %2404 = vmatpush1.bf16.msra.mxu0 %v2385
    %2405 = vmatprep.subr.bf16.mxu0 0
    %2406 = vmatpush1.bf16.msra.mxu0 %v2386
    %2407 = vmatprep.subr.bf16.mxu0 0
    %2408 = vmatpush1.bf16.msra.mxu0 %v2387
    %2409 = vmatprep.subr.bf16.mxu0 0
    %2410 = vmatpush1.bf16.msra.mxu0 %v2388
    %2411 = vmatprep.subr.bf16.mxu0 0
    %2412 = vmatpush1.bf16.msra.mxu0 %v2389
    %2413 = vmatprep.subr.bf16.mxu0 0
    %2414 = vmatpush1.bf16.msra.mxu0 %v2390
    %2415 = vmatprep.subr.bf16.mxu0 0
    %2416 = vmatpush1.bf16.msra.mxu0 0
    %2417 = vmatprep.subr.bf16.mxu0 0
    %2418 = vmatpush1.bf16.msra.mxu0 0
    %2419 = vmatprep.subr.bf16.mxu0 0
    %2420 = vmatpush1.bf16.msra.mxu0 0
    %2421 = vmatprep.subr.bf16.mxu0 0
    %2422 = vmatpush1.bf16.msra.mxu0 0
    %2423 = vmatprep.subr.bf16.mxu0 0
    %2424 = vmatpush1.bf16.msra.mxu0 0
    %2425 = vmatprep.subr.bf16.mxu0 0
    %2426 = vmatpush1.bf16.msra.mxu0 0
    %2427 = vmatprep.subr.bf16.mxu0 0
    %2428 = vmatpush1.bf16.msra.mxu0 0
    %2429 = vmatprep.subr.bf16.mxu0 0
    %2430 = vmatpush1.bf16.msra.mxu0 0
    %2431 = vmatprep.mubr.bf16.mxu0 0
    %2432 = vmatmul.mubr.bf16.gmra.mrb[0].mxu0 %v304
    %v2433 = vpop.f32.mrb[0].mxu0
    %v2434 = vadd.f32 %v2349, %v2433
    %v2435 = vpop.f32.mrb[0].mxu0
    %v2436 = vpop.f32.mrb[0].mxu0
    %v2437 = vadd.f32 %v2349, %v2436
    %v2438 = vpop.f32.mrb[0].mxu0
    %2439 = vmatprep.mubr.bf16.mxu0 0
    %2440 = vmatmul.mubr.bf16.gmra.mrb[0].mxu0 %v305
    %v2441 = vpop.f32.mrb[0].mxu0
    %v2442 = vadd.f32 %v2349, %v2441
    %v2443 = vpop.f32.mrb[0].mxu0
    %v2444 = vpop.f32.mrb[0].mxu0
    %v2445 = vadd.f32 %v2349, %v2444
    %v2446 = vpop.f32.mrb[0].mxu0
    %2447 = vmatprep.mubr.bf16.mxu0 0
    %2448 = vmatmul.mubr.bf16.gmra.mrb[0].mxu0 %v306
    %v2449 = vpop.f32.mrb[0].mxu0
    %v2450 = vadd.f32 %v2349, %v2449
    %v2451 = vpop.f32.mrb[0].mxu0
    %v2452 = vpop.f32.mrb[0].mxu0
    %v2453 = vadd.f32 %v2349, %v2452
    %v2454 = vpop.f32.mrb[0].mxu0
    %2455 = vmatprep.mubr.bf16.mxu0 0
    %2456 = vmatmul.mubr.bf16.gmra.mrb[0].mxu0 %v307
    %v2457 = vpop.f32.mrb[0].mxu0
    %v2458 = vadd.f32 %v2349, %v2457
    %v2459 = vpop.f32.mrb[0].mxu0
    %v2460 = vpop.f32.mrb[0].mxu0
    %v2461 = vadd.f32 %v2349, %v2460
    %v2462 = vpop.f32.mrb[0].mxu0
    %2463 = vmatprep.mubr.bf16.mxu0 0
    %2464 = vmatmul.mubr.bf16.gmra.mrb[0].mxu0 %v308
    %v2465 = vpop.f32.mrb[0].mxu0
    %v2466 = vadd.f32 %v2349, %v2465
    %v2467 = vpop.f32.mrb[0].mxu0
    %v2468 = vpop.f32.mrb[0].mxu0
    %v2469 = vadd.f32 %v2349, %v2468
    %v2470 = vpop.f32.mrb[0].mxu0
    %2471 = vmatprep.mubr.bf16.mxu0 0
    %2472 = vmatmul.mubr.bf16.gmra.mrb[0].mxu0 %v309
    %v2473 = vpop.f32.mrb[0].mxu0
    %v2474 = vadd.f32 %v2349, %v2473
    %v2475 = vpop.f32.mrb[0].mxu0
    %v2476 = vpop.f32.mrb[0].mxu0
    %v2477 = vadd.f32 %v2349, %v2476
    %v2478 = vpop.f32.mrb[0].mxu0
    %2479 = vmatprep.mubr.bf16.mxu0 0
    %2480 = vmatmul.mubr.bf16.gmra.mrb[0].mxu0 %v310
    %v2481 = vpop.f32.mrb[0].mxu0
    %v2482 = vadd.f32 %v2349, %v2481
    %v2483 = vpop.f32.mrb[0].mxu0
    %v2484 = vpop.f32.mrb[0].mxu0
    %v2485 = vadd.f32 %v2349, %v2484
    %v2486 = vpop.f32.mrb[0].mxu0
    %2487 = vmatprep.mubr.bf16.mxu0 0
    %2488 = vmatmul.mubr.bf16.gmra.mrb[0].mxu0 %v311
    %v2489 = vpop.f32.mrb[0].mxu0
    %v2490 = vadd.f32 %v2349, %v2489
    %v2491 = vpop.f32.mrb[0].mxu0
    %v2492 = vpop.f32.mrb[0].mxu0
    %v2493 = vadd.f32 %v2349, %v2492
    %v2494 = vpop.f32.mrb[0].mxu0
    %2495 = vdwg.mxu0
    %v2496 = vld [vmem:[#allocation9] sm:$0xf]
    %v2497 = vld [vmem:[#allocation9 + $0x4] sm:$0xf]
    %v2498 = vld [vmem:[#allocation9 + $0x8] sm:$0xf]
    %v2499 = vld [vmem:[#allocation9 + $0xc] sm:$0xf]
    %v2500 = vld [vmem:[#allocation9 + $0x10] sm:$0xf]
    %v2501 = vld [vmem:[#allocation9 + $0x14] sm:$0xf]
    %v2502 = vld [vmem:[#allocation9 + $0x18] sm:$0xf]
    %v2503 = vld [vmem:[#allocation9 + $0x1c] sm:$0xf]
    %v2504 = vld [vmem:[#allocation9 + $0x20] sm:$0xf]
    %v2505 = vld [vmem:[#allocation9 + $0x24] sm:$0xf]
    %v2506 = vld [vmem:[#allocation9 + $0x28] sm:$0xf]
    %v2507 = vld [vmem:[#allocation9 + $0x2c] sm:$0xf]
    %v2508 = vld [vmem:[#allocation9 + $0x30] sm:$0xf]
    %v2509 = vld [vmem:[#allocation9 + $0x34] sm:$0xf]
    %v2510 = vld [vmem:[#allocation9 + $0x38] sm:$0xf]
    %v2511 = vld [vmem:[#allocation9 + $0x3c] sm:$0xf]
    %v2528 = vunpack.c.l.b16 %v2496
    %v2529 = vunpack.c.l.b16 %v2497
    %v2530 = vunpack.c.l.b16 %v2498
    %v2531 = vunpack.c.l.b16 %v2499
    %v2532 = vunpack.c.l.b16 %v2500
    %v2533 = vunpack.c.l.b16 %v2501
    %v2534 = vunpack.c.l.b16 %v2502
    %v2535 = vunpack.c.l.b16 %v2503
    %v2536 = vunpack.c.l.b16 %v2504
    %v2537 = vunpack.c.l.b16 %v2505
    %v2538 = vunpack.c.l.b16 %v2506
    %v2539 = vunpack.c.l.b16 %v2507
    %v2540 = vunpack.c.l.b16 %v2508
    %v2541 = vunpack.c.l.b16 %v2509
    %v2542 = vunpack.c.l.b16 %v2510
    %v2543 = vunpack.c.l.b16 %v2511
    %v2544 = vpack.c.b16 %v2529, %v2528
    %v2545 = vpack.c.b16 %v2531, %v2530
    %v2546 = vpack.c.b16 %v2533, %v2532
    %v2547 = vpack.c.b16 %v2535, %v2534
    %v2548 = vpack.c.b16 %v2537, %v2536
    %v2549 = vpack.c.b16 %v2539, %v2538
    %v2550 = vpack.c.b16 %v2541, %v2540
    %v2551 = vpack.c.b16 %v2543, %v2542
    %2560 = vmatprep.subr.bf16.mxu0 0
    %2561 = vmatpush1.bf16.msra.mxu0 %v2544
    %2562 = vmatprep.subr.bf16.mxu0 0
    %2563 = vmatpush1.bf16.msra.mxu0 %v2545
    %2564 = vmatprep.subr.bf16.mxu0 0
    %2565 = vmatpush1.bf16.msra.mxu0 %v2546
    %2566 = vmatprep.subr.bf16.mxu0 0
    %2567 = vmatpush1.bf16.msra.mxu0 %v2547
    %2568 = vmatprep.subr.bf16.mxu0 0
    %2569 = vmatpush1.bf16.msra.mxu0 %v2548
    %2570 = vmatprep.subr.bf16.mxu0 0
    %2571 = vmatpush1.bf16.msra.mxu0 %v2549
    %2572 = vmatprep.subr.bf16.mxu0 0
    %2573 = vmatpush1.bf16.msra.mxu0 %v2550
    %2574 = vmatprep.subr.bf16.mxu0 0
    %2575 = vmatpush1.bf16.msra.mxu0 %v2551
    %2576 = vmatprep.subr.bf16.mxu0 0
    %2577 = vmatpush1.bf16.msra.mxu0 0
    %2578 = vmatprep.subr.bf16.mxu0 0
    %2579 = vmatpush1.bf16.msra.mxu0 0
    %2580 = vmatprep.subr.bf16.mxu0 0
    %2581 = vmatpush1.bf16.msra.mxu0 0
    %2582 = vmatprep.subr.bf16.mxu0 0
    %2583 = vmatpush1.bf16.msra.mxu0 0
    %2584 = vmatprep.subr.bf16.mxu0 0
    %2585 = vmatpush1.bf16.msra.mxu0 0
    %2586 = vmatprep.subr.bf16.mxu0 0
    %2587 = vmatpush1.bf16.msra.mxu0 0
    %2588 = vmatprep.subr.bf16.mxu0 0
    %2589 = vmatpush1.bf16.msra.mxu0 0
    %2590 = vmatprep.subr.bf16.mxu0 0
    %2591 = vmatpush1.bf16.msra.mxu0 0
    %2592 = vmatprep.mubr.bf16.mxu0 0
    %2593 = vmatmul.mubr.bf16.gmra.mrb[0].mxu0 %v2320
    %v2594 = vpop.f32.mrb[0].mxu0
    %v2595 = vadd.f32 0.0, %v2594
    %v2596 = vpop.f32.mrb[0].mxu0
    %v2597 = vpop.f32.mrb[0].mxu0
    %v2598 = vadd.f32 0.0, %v2597
    %v2599 = vpop.f32.mrb[0].mxu0
    %2600 = vmatprep.mubr.bf16.mxu0 0
    %2601 = vmatmul.mubr.bf16.gmra.mrb[0].mxu0 %v2321
    %v2602 = vpop.f32.mrb[0].mxu0
    %v2603 = vadd.f32 0.0, %v2602
    %v2604 = vpop.f32.mrb[0].mxu0
    %v2605 = vpop.f32.mrb[0].mxu0
    %v2606 = vadd.f32 0.0, %v2605
    %v2607 = vpop.f32.mrb[0].mxu0
    %2608 = vmatprep.mubr.bf16.mxu0 0
    %2609 = vmatmul.mubr.bf16.gmra.mrb[0].mxu0 %v2322
    %v2610 = vpop.f32.mrb[0].mxu0
    %v2611 = vadd.f32 0.0, %v2610
    %v2612 = vpop.f32.mrb[0].mxu0
    %v2613 = vpop.f32.mrb[0].mxu0
    %v2614 = vadd.f32 0.0, %v2613
    %v2615 = vpop.f32.mrb[0].mxu0
    %2616 = vmatprep.mubr.bf16.mxu0 0
    %2617 = vmatmul.mubr.bf16.gmra.mrb[0].mxu0 %v2323
    %v2618 = vpop.f32.mrb[0].mxu0
    %v2619 = vadd.f32 0.0, %v2618
    %v2620 = vpop.f32.mrb[0].mxu0
    %v2621 = vpop.f32.mrb[0].mxu0
    %v2622 = vadd.f32 0.0, %v2621
    %v2623 = vpop.f32.mrb[0].mxu0
    %2624 = vmatprep.mubr.bf16.mxu0 0
    %2625 = vmatmul.mubr.bf16.gmra.mrb[0].mxu0 %v2324
    %v2626 = vpop.f32.mrb[0].mxu0
    %v2627 = vadd.f32 0.0, %v2626
    %v2628 = vpop.f32.mrb[0].mxu0
    %v2629 = vpop.f32.mrb[0].mxu0
    %v2630 = vadd.f32 0.0, %v2629
    %v2631 = vpop.f32.mrb[0].mxu0
    %2632 = vmatprep.mubr.bf16.mxu0 0
    %2633 = vmatmul.mubr.bf16.gmra.mrb[0].mxu0 %v2325
    %v2634 = vpop.f32.mrb[0].mxu0
    %v2635 = vadd.f32 0.0, %v2634
    %v2636 = vpop.f32.mrb[0].mxu0
    %v2637 = vpop.f32.mrb[0].mxu0
    %v2638 = vadd.f32 0.0, %v2637
    %v2639 = vpop.f32.mrb[0].mxu0
    %2640 = vmatprep.mubr.bf16.mxu0 0
    %2641 = vmatmul.mubr.bf16.gmra.mrb[0].mxu0 %v2326
    %v2642 = vpop.f32.mrb[0].mxu0
    %v2643 = vadd.f32 0.0, %v2642
    %v2644 = vpop.f32.mrb[0].mxu0
    %v2645 = vpop.f32.mrb[0].mxu0
    %v2646 = vadd.f32 0.0, %v2645
    %v2647 = vpop.f32.mrb[0].mxu0
    %2648 = vmatprep.mubr.bf16.mxu0 0
    %2649 = vmatmul.mubr.bf16.gmra.mrb[0].mxu0 %v2327
    %v2650 = vpop.f32.mrb[0].mxu0
    %v2651 = vadd.f32 0.0, %v2650
    %v2652 = vpop.f32.mrb[0].mxu0
    %v2653 = vpop.f32.mrb[0].mxu0
    %v2654 = vadd.f32 0.0, %v2653
    %v2655 = vpop.f32.mrb[0].mxu0
    %2656 = vdwg.mxu0
    %v2657 = vadd.f32 %v2434, %v2595
    %v2658 = vadd.f32 %v2437, %v2598
    %v2659 = vadd.f32 %v2442, %v2603
    %v2660 = vadd.f32 %v2445, %v2606
    %v2661 = vadd.f32 %v2450, %v2611
    %v2662 = vadd.f32 %v2453, %v2614
    %v2663 = vadd.f32 %v2458, %v2619
    %v2664 = vadd.f32 %v2461, %v2622
    %v2665 = vadd.f32 %v2466, %v2627
    %v2666 = vadd.f32 %v2469, %v2630
    %v2667 = vadd.f32 %v2474, %v2635
    %v2668 = vadd.f32 %v2477, %v2638
    %v2669 = vadd.f32 %v2482, %v2643
    %v2670 = vadd.f32 %v2485, %v2646
    %v2671 = vadd.f32 %v2490, %v2651
    %v2672 = vadd.f32 %v2493, %v2654
    %v2673 = vld [vmem:[%s6] sm:$0x1]
    %v2675 = vlaneseq
    %v2676 = vshrl.u32 %v2675, 7
    %v2677 = vsub.s32 0, %v2676
    %v2678 = vrot.slane %v2673, %v2677
    %v2680 = vadd.f32 %v2657, %v2678
    %v2681 = vadd.f32 %v2658, %v2678
    %v2682 = vadd.f32 %v2659, %v2678
    %v2683 = vadd.f32 %v2660, %v2678
    %v2684 = vadd.f32 %v2661, %v2678
    %v2685 = vadd.f32 %v2662, %v2678
    %v2686 = vadd.f32 %v2663, %v2678
    %v2687 = vadd.f32 %v2664, %v2678
    %v2688 = vadd.f32 %v2665, %v2678
    %v2689 = vadd.f32 %v2666, %v2678
    %v2690 = vadd.f32 %v2667, %v2678
    %v2691 = vadd.f32 %v2668, %v2678
    %v2692 = vadd.f32 %v2669, %v2678
    %v2693 = vadd.f32 %v2670, %v2678
    %v2694 = vadd.f32 %v2671, %v2678
    %v2695 = vadd.f32 %v2672, %v2678
    %v2696 = vmax.f32 %v2680, 0.0
    %v2697 = vmax.f32 %v2681, 0.0
    %v2698 = vmax.f32 %v2682, 0.0
    %v2699 = vmax.f32 %v2683, 0.0
    %v2700 = vmax.f32 %v2684, 0.0
    %v2701 = vmax.f32 %v2685, 0.0
    %v2702 = vmax.f32 %v2686, 0.0
    %v2703 = vmax.f32 %v2687, 0.0
    %v2704 = vmax.f32 %v2688, 0.0
    %v2705 = vmax.f32 %v2689, 0.0
    %v2706 = vmax.f32 %v2690, 0.0
    %v2707 = vmax.f32 %v2691, 0.0
    %v2708 = vmax.f32 %v2692, 0.0
    %v2709 = vmax.f32 %v2693, 0.0
    %v2710 = vmax.f32 %v2694, 0.0
    %v2711 = vmax.f32 %v2695, 0.0
    %v2712 = vpack.c.bf16 %v2697, %v2696
    %v2713 = vpack.c.bf16 %v2699, %v2698
    %v2714 = vpack.c.bf16 %v2701, %v2700
    %v2715 = vpack.c.bf16 %v2703, %v2702
    %v2716 = vpack.c.bf16 %v2705, %v2704
    %v2717 = vpack.c.bf16 %v2707, %v2706
    %v2718 = vpack.c.bf16 %v2709, %v2708
    %v2719 = vpack.c.bf16 %v2711, %v2710
    %v2728 = vunpack.c.l.b16 %v2712
    %v2729 = vunpack.c.h.b16 %v2712
    %v2730 = vunpack.c.l.b16 %v2713
    %v2731 = vunpack.c.h.b16 %v2713
    %v2732 = vunpack.c.l.b16 %v2714
    %v2733 = vunpack.c.h.b16 %v2714
    %v2734 = vunpack.c.l.b16 %v2715
    %v2735 = vunpack.c.h.b16 %v2715
    %v2736 = vunpack.c.l.b16 %v2716
    %v2737 = vunpack.c.h.b16 %v2716
    %v2738 = vunpack.c.l.b16 %v2717
    %v2739 = vunpack.c.h.b16 %v2717
    %v2740 = vunpack.c.l.b16 %v2718
    %v2741 = vunpack.c.h.b16 %v2718
    %v2742 = vunpack.c.l.b16 %v2719
    %v2743 = vunpack.c.h.b16 %v2719
    %v2744 = vpack.c.b16 %v2728, %v2728
    %v2745 = vpack.c.b16 %v2729, %v2729
    %v2746 = vpack.c.b16 %v2730, %v2730
    %v2747 = vpack.c.b16 %v2731, %v2731
    %v2748 = vpack.c.b16 %v2732, %v2732
    %v2749 = vpack.c.b16 %v2733, %v2733
    %v2750 = vpack.c.b16 %v2734, %v2734
    %v2751 = vpack.c.b16 %v2735, %v2735
    %v2752 = vpack.c.b16 %v2736, %v2736
    %v2753 = vpack.c.b16 %v2737, %v2737
    %v2754 = vpack.c.b16 %v2738, %v2738
    %v2755 = vpack.c.b16 %v2739, %v2739
    %v2756 = vpack.c.b16 %v2740, %v2740
    %v2757 = vpack.c.b16 %v2741, %v2741
    %v2758 = vpack.c.b16 %v2742, %v2742
    %v2759 = vpack.c.b16 %v2743, %v2743
    %2776 = vst [vmem:[#allocation12] sm:$0xf] %v2744
    %2777 = vst [vmem:[#allocation12 + $0x4] sm:$0xf] %v2745
    %2778 = vst [vmem:[#allocation12 + $0x8] sm:$0xf] %v2746
    %2779 = vst [vmem:[#allocation12 + $0xc] sm:$0xf] %v2747
    %2780 = vst [vmem:[#allocation12 + $0x10] sm:$0xf] %v2748
    %2781 = vst [vmem:[#allocation12 + $0x14] sm:$0xf] %v2749
    %2782 = vst [vmem:[#allocation12 + $0x18] sm:$0xf] %v2750
    %2783 = vst [vmem:[#allocation12 + $0x1c] sm:$0xf] %v2751
    %2784 = vst [vmem:[#allocation12 + $0x20] sm:$0xf] %v2752
    %2785 = vst [vmem:[#allocation12 + $0x24] sm:$0xf] %v2753
    %2786 = vst [vmem:[#allocation12 + $0x28] sm:$0xf] %v2754
    %2787 = vst [vmem:[#allocation12 + $0x2c] sm:$0xf] %v2755
    %2788 = vst [vmem:[#allocation12 + $0x30] sm:$0xf] %v2756
    %2789 = vst [vmem:[#allocation12 + $0x34] sm:$0xf] %v2757
    %2790 = vst [vmem:[#allocation12 + $0x38] sm:$0xf] %v2758
    %2791 = vst [vmem:[#allocation12 + $0x3c] sm:$0xf] %v2759
    // Predicated region
    $region58: #{tpu_custom_call.1} parent=1 // pred_check
      _
    $region59: #{tpu_custom_call.1} parent=1 // pred_check_branch
      %2793 = sbr.rel (0) target = $region61
    $region60: #{tpu_custom_call.1} parent=1 // pred_region
      %s2795 = ssub.s32 1024, 1024
      %2796 = vsyncadd [#allocation5], %s2795
      %s2797 = sshll.u32 [#allocation12], 4
      %s2798 = int_to_ptr.vmem [resolvable:$true] %s2797
      %2803 = dma.vmem_to_hbm [thread:$0]  %s2798, 1024, %s9, [#allocation5], 64, 64, 4
    $region61: #{tpu_custom_call.1} parent=1 // pred_fallthru
      _
    // Predicated region
    $region62: #{tpu_custom_call.1} parent=1 // pred_check
      _
    $region63: #{tpu_custom_call.1} parent=1 // pred_check_branch
      %2805 = sbr.rel (0) target = $region65
    $region64: #{tpu_custom_call.1} parent=1 // pred_region
      %2806 = dma.done [#allocation5], 1024
    $region65: #{tpu_custom_call.1} parent=1 // pred_fallthru
      _
    %2807 = vsyncpa [#allocation4], 1
    %2808 = vsyncpa [#allocation7], 1
    %2809 = vsyncpa [#allocation10], 1
    %2810 = vsyncpa [#allocation5], 1

</llo_original>
